<compile_context>
chip_gen: v5e
topology: v5e:2x2
jax: 0.10.0
libtpu: 0.0.40
codegen_flags: <defaults>
</compile_context>

<pallas_src>
import functools

import jax
import jax.numpy as jnp
from jax.experimental import pallas as pl
from jax.experimental.pallas import tpu as pltpu


def _conv2d_kernel(x_ref, w_ref, b_ref, o_ref, *, kh, kw, oh, ow):
    """One image per grid step.

    x_ref: (1, H, W, Cin)        NHWC input block
    w_ref: (KH*KW*Cin, Cout_pad) flattened HWIO weight (Cout padded to 128*)
    b_ref: (1, Cout_pad)         padded bias
    o_ref: (1, OH*OW, Cout_pad)  lane-dense output slab
    """
    cin = x_ref.shape[-1]

    # im2col: gather the KH*KW shifted windows and concatenate along the
    # channel axis.  Ordering (i outer, j middle, c inner) matches the
    # reshape of the HWIO weight to (KH*KW*Cin, Cout_pad).
    cols = []
    for i in range(kh):
        for j in range(kw):
            cols.append(x_ref[0, i:i + oh, j:j + ow, :])       # (OH, OW, Cin)
    patches = jnp.concatenate(cols, axis=-1)                   # (OH, OW, K)
    patches = patches.reshape(oh * ow, kh * kw * cin)          # (rows, K)

    # Single MXU push: (rows, K) x (K, Cout_pad) -> (rows, Cout_pad), f32 acc.
    acc = jnp.dot(patches, w_ref[...], preferred_element_type=jnp.float32)
    acc = acc + b_ref[...]                                     # broadcast bias

    o_ref[0, :, :] = acc.astype(o_ref.dtype)


def prepare_conv_params(weight_oihw, bias):
    """Hoisted (init-time) parameter layout transform + channel padding."""
    cout, cin, kh, kw = weight_oihw.shape
    cout_pad = ((cout + 127) // 128) * 128
    w_hwio = jnp.transpose(weight_oihw, (2, 3, 1, 0))          # (KH, KW, Cin, Cout)
    w2d = w_hwio.reshape(kh * kw * cin, cout)                  # (K, Cout)
    w2d = jnp.pad(w2d, ((0, 0), (0, cout_pad - cout)))         # (K, Cout_pad)
    b2d = jnp.pad(bias, (0, cout_pad - cout)).reshape(1, cout_pad)
    return w2d, b2d


def conv2d_pallas(x_nhwc, w2d, b2d, *, kh, kw):
    n, h, w, cin = x_nhwc.shape
    k, cout_pad = w2d.shape
    oh, ow = h - kh + 1, w - kw + 1

    kernel = functools.partial(_conv2d_kernel, kh=kh, kw=kw, oh=oh, ow=ow)

    flops = 2 * n * oh * ow * k * cout_pad
    bytes_accessed = (x_nhwc.size + w2d.size + b2d.size
                      + n * oh * ow * cout_pad) * 4

    return pl.pallas_call(
        kernel,
        out_shape=jax.ShapeDtypeStruct((n, oh * ow, cout_pad), x_nhwc.dtype),
        grid_spec=pltpu.PrefetchScalarGridSpec(
            num_scalar_prefetch=0,
            grid=(n,),
            in_specs=[
                pl.BlockSpec((1, h, w, cin), lambda b: (b, 0, 0, 0)),
                pl.BlockSpec((k, cout_pad), lambda b: (0, 0)),
                pl.BlockSpec((1, cout_pad), lambda b: (0, 0)),
            ],
            out_specs=pl.BlockSpec((1, oh * ow, cout_pad), lambda b: (b, 0, 0)),
        ),
        compiler_params=pltpu.CompilerParams(
            dimension_semantics=("parallel",)),
        cost_estimate=pl.CostEstimate(
            flops=flops, transcendentals=0, bytes_accessed=bytes_accessed),
    )(x_nhwc, w2d, b2d)


@functools.partial(jax.jit, static_argnames=("cout", "kh", "kw"))
def model_forward(x_nchw, w2d, b2d, *, cout, kh, kw):
    """Equivalent of Model.forward: nn.Conv2d(in_ch, out_ch, k) on NCHW input."""
    n, _, h, w = x_nchw.shape
    oh, ow = h - kh + 1, w - kw + 1
    x_nhwc = jnp.transpose(x_nchw, (0, 2, 3, 1))               # NCHW -> NHWC
    y = conv2d_pallas(x_nhwc, w2d, b2d, kh=kh, kw=kw)          # (N, OH*OW, Cpad)
    y = y[:, :, :cout].reshape(n, oh, ow, cout)                # drop pad chans
    return jnp.transpose(y, (0, 3, 1, 2))                      # NHWC -> NCHW


if __name__ == "__main__":
    key = jax.random.PRNGKey(0)
    batch, in_channels, out_channels, kernel_size, spatial = 2, 4, 8, 3, 16

    kx, kwt, kb = jax.random.split(key, 3)
    x = jax.random.normal(kx, (batch, in_channels, spatial, spatial),
                          dtype=jnp.float32)
    # Deterministic Conv2d parameters (same shapes as nn.Conv2d(4, 8, 3)).
    fan_in = in_channels * kernel_size * kernel_size
    bound = 1.0 / (fan_in ** 0.5)
    weight = jax.random.uniform(
        kwt, (out_channels, in_channels, kernel_size, kernel_size),
        minval=-bound, maxval=bound, dtype=jnp.float32)
    bias = jax.random.uniform(kb, (out_channels,),
                              minval=-bound, maxval=bound, dtype=jnp.float32)

    # Init-time (hoisted) parameter transform.
    w2d, b2d = prepare_conv_params(weight, bias)

    out = model_forward(x, w2d, b2d,
                        cout=out_channels, kh=kernel_size, kw=kernel_size)
    jax.block_until_ready(out)

    # Reference check against XLA's convolution.
    ref = jax.lax.conv_general_dilated(
        x, weight, window_strides=(1, 1), padding="VALID",
        dimension_numbers=("NCHW", "OIHW", "NCHW"))
    ref = ref + bias[None, :, None, None]
    assert out.shape == (batch, out_channels,
                         spatial - kernel_size + 1, spatial - kernel_size + 1)
    assert jnp.allclose(out, ref, atol=1e-5, rtol=1e-5)

    print("KERNEL_OK")
</pallas_src>

<mosaic_0001>
module attributes {stable_mosaic.version = 11 : i64} {
  func.func @_conv2d_kernel(%arg0: i32, %arg1: memref<1x16x16x4xf32, #tpu.memory_space<vmem>>, %arg2: memref<36x128xf32, #tpu.memory_space<vmem>>, %arg3: memref<1x128xf32, #tpu.memory_space<vmem>>, %arg4: memref<1x196x128xf32, #tpu.memory_space<vmem>>) attributes {dimension_semantics = [#tpu.dimension_semantics<parallel>], iteration_bounds = array<i64: 2>, scalar_prefetch = 0 : i64, scratch_operands = 0 : i64, tpu.core_type = #tpu.core_type<tc>, window_params = [{transform_indices = @transform_0, window_bounds = array<i64: 1, 16, 16, 4>}, {pipeline_mode = #tpu.pipeline_mode<synchronous>, transform_indices = @transform_1, window_bounds = array<i64: 36, 128>}, {pipeline_mode = #tpu.pipeline_mode<synchronous>, transform_indices = @transform_2, window_bounds = array<i64: 1, 128>}, {transform_indices = @transform_3, window_bounds = array<i64: 1, 196, 128>}]} {
    %c0 = arith.constant 0 : index
    %c0_0 = arith.constant 0 : index
    %c0_1 = arith.constant 0 : index
    %c0_2 = arith.constant 0 : index
    %0 = vector.load %arg1[%c0, %c0_0, %c0_1, %c0_2] : memref<1x16x16x4xf32, #tpu.memory_space<vmem>>, vector<1x14x14x4xf32>
    %1 = vector.shape_cast %0 : vector<1x14x14x4xf32> to vector<14x14x4xf32>
    %c0_3 = arith.constant 0 : index
    %c0_4 = arith.constant 0 : index
    %c1 = arith.constant 1 : index
    %c0_5 = arith.constant 0 : index
    %2 = vector.load %arg1[%c0_3, %c0_4, %c1, %c0_5] : memref<1x16x16x4xf32, #tpu.memory_space<vmem>>, vector<1x14x14x4xf32>
    %3 = vector.shape_cast %2 : vector<1x14x14x4xf32> to vector<14x14x4xf32>
    %c0_6 = arith.constant 0 : index
    %c0_7 = arith.constant 0 : index
    %c2 = arith.constant 2 : index
    %c0_8 = arith.constant 0 : index
    %4 = vector.load %arg1[%c0_6, %c0_7, %c2, %c0_8] : memref<1x16x16x4xf32, #tpu.memory_space<vmem>>, vector<1x14x14x4xf32>
    %5 = vector.shape_cast %4 : vector<1x14x14x4xf32> to vector<14x14x4xf32>
    %c0_9 = arith.constant 0 : index
    %c1_10 = arith.constant 1 : index
    %c0_11 = arith.constant 0 : index
    %c0_12 = arith.constant 0 : index
    %6 = vector.load %arg1[%c0_9, %c1_10, %c0_11, %c0_12] : memref<1x16x16x4xf32, #tpu.memory_space<vmem>>, vector<1x14x14x4xf32>
    %7 = vector.shape_cast %6 : vector<1x14x14x4xf32> to vector<14x14x4xf32>
    %c0_13 = arith.constant 0 : index
    %c1_14 = arith.constant 1 : index
    %c1_15 = arith.constant 1 : index
    %c0_16 = arith.constant 0 : index
    %8 = vector.load %arg1[%c0_13, %c1_14, %c1_15, %c0_16] : memref<1x16x16x4xf32, #tpu.memory_space<vmem>>, vector<1x14x14x4xf32>
    %9 = vector.shape_cast %8 : vector<1x14x14x4xf32> to vector<14x14x4xf32>
    %c0_17 = arith.constant 0 : index
    %c1_18 = arith.constant 1 : index
    %c2_19 = arith.constant 2 : index
    %c0_20 = arith.constant 0 : index
    %10 = vector.load %arg1[%c0_17, %c1_18, %c2_19, %c0_20] : memref<1x16x16x4xf32, #tpu.memory_space<vmem>>, vector<1x14x14x4xf32>
    %11 = vector.shape_cast %10 : vector<1x14x14x4xf32> to vector<14x14x4xf32>
    %c0_21 = arith.constant 0 : index
    %c2_22 = arith.constant 2 : index
    %c0_23 = arith.constant 0 : index
    %c0_24 = arith.constant 0 : index
    %12 = vector.load %arg1[%c0_21, %c2_22, %c0_23, %c0_24] : memref<1x16x16x4xf32, #tpu.memory_space<vmem>>, vector<1x14x14x4xf32>
    %13 = vector.shape_cast %12 : vector<1x14x14x4xf32> to vector<14x14x4xf32>
    %c0_25 = arith.constant 0 : index
    %c2_26 = arith.constant 2 : index
    %c1_27 = arith.constant 1 : index
    %c0_28 = arith.constant 0 : index
    %14 = vector.load %arg1[%c0_25, %c2_26, %c1_27, %c0_28] : memref<1x16x16x4xf32, #tpu.memory_space<vmem>>, vector<1x14x14x4xf32>
    %15 = vector.shape_cast %14 : vector<1x14x14x4xf32> to vector<14x14x4xf32>
    %c0_29 = arith.constant 0 : index
    %c2_30 = arith.constant 2 : index
    %c2_31 = arith.constant 2 : index
    %c0_32 = arith.constant 0 : index
    %16 = vector.load %arg1[%c0_29, %c2_30, %c2_31, %c0_32] : memref<1x16x16x4xf32, #tpu.memory_space<vmem>>, vector<1x14x14x4xf32>
    %17 = vector.shape_cast %16 : vector<1x14x14x4xf32> to vector<14x14x4xf32>
    %18 = tpu.concatenate %1, %3, %5, %7, %9, %11, %13, %15, %17 in 2 : vector<14x14x4xf32>, vector<14x14x4xf32>, vector<14x14x4xf32>, vector<14x14x4xf32>, vector<14x14x4xf32>, vector<14x14x4xf32>, vector<14x14x4xf32>, vector<14x14x4xf32>, vector<14x14x4xf32> -> vector<14x14x36xf32>
    %19 = vector.shape_cast %18 : vector<14x14x36xf32> to vector<196x36xf32>
    %c0_33 = arith.constant 0 : index
    %c0_34 = arith.constant 0 : index
    %20 = vector.load %arg2[%c0_33, %c0_34] : memref<36x128xf32, #tpu.memory_space<vmem>>, vector<36x128xf32>
    %cst = arith.constant dense<0.000000e+00> : vector<196x128xf32>
    %21 = tpu.matmul %19, %20, %cst {dimension_numbers = #tpu.dot_dimension_numbers<[1], [0], [0], [1], [0, 0, 1, 1], [], []>} : vector<196x36xf32>, vector<36x128xf32>, vector<196x128xf32> -> vector<196x128xf32>
    %c0_35 = arith.constant 0 : index
    %c0_36 = arith.constant 0 : index
    %22 = vector.load %arg3[%c0_35, %c0_36] : memref<1x128xf32, #tpu.memory_space<vmem>>, vector<1x128xf32>
    %23 = vector.broadcast %22 : vector<1x128xf32> to vector<196x128xf32>
    %24 = arith.addf %21, %23 : vector<196x128xf32>
    %c0_37 = arith.constant 0 : index
    %c0_38 = arith.constant 0 : index
    %c0_39 = arith.constant 0 : index
    %25 = vector.load %arg4[%c0_37, %c0_38, %c0_39] : memref<1x196x128xf32, #tpu.memory_space<vmem>>, vector<1x196x128xf32>
    %26 = vector.shape_cast %25 : vector<1x196x128xf32> to vector<196x128xf32>
    %27 = vector.shape_cast %24 : vector<196x128xf32> to vector<1x196x128xf32>
    tpu.vector_store %arg4[%c0_37, %c0_38, %c0_39], %27 {strides = array<i32>} : memref<1x196x128xf32, #tpu.memory_space<vmem>>, vector<1x196x128xf32>,
    return
  }
  func.func @transform_0(%arg0: i32) -> (i32, i32, i32, i32) {
    %c0_i32 = arith.constant 0 : i32
    %c0_i32_0 = arith.constant 0 : i32
    %c0_i32_1 = arith.constant 0 : i32
    %c0_i32_2 = arith.constant 0 : i32
    return %arg0, %c0_i32, %c0_i32_0, %c0_i32_1 : i32, i32, i32, i32
  }
  func.func @transform_1(%arg0: i32) -> (i32, i32) {
    %c0_i32 = arith.constant 0 : i32
    %c0_i32_0 = arith.constant 0 : i32
    %c0_i32_1 = arith.constant 0 : i32
    return %c0_i32, %c0_i32_0 : i32, i32
  }
  func.func @transform_2(%arg0: i32) -> (i32, i32) {
    %c0_i32 = arith.constant 0 : i32
    %c0_i32_0 = arith.constant 0 : i32
    %c0_i32_1 = arith.constant 0 : i32
    return %c0_i32, %c0_i32_0 : i32, i32
  }
  func.func @transform_3(%arg0: i32) -> (i32, i32, i32) {
    %c0_i32 = arith.constant 0 : i32
    %c0_i32_0 = arith.constant 0 : i32
    %c0_i32_1 = arith.constant 0 : i32
    return %arg0, %c0_i32, %c0_i32_0 : i32, i32, i32
  }
}

</mosaic_0001>

<llo_original>
// kernel: model_forward.1
$region0: #{model_forward.1}
  #allocation0 [shape = 'u32[]', space=smem, size = 0x4, offset = 0x4, fixed_abs, tag = 'smem constant byte address 0x4 - core index']
  #allocation1 [shape = 'u32[72,128]{1,0:T(1,128)}', space=vmem, size = 0x9000, scoped, tag = 'internal scratch']
  %s0 = inlined_call_operand.vmem [shape: f32[2,16,16,4], index: 0, kind: input, shape index: {}]
  %s1 = inlined_call_operand.vmem [shape: f32[36,128], index: 1, kind: input, shape index: {}]
  %s2 = inlined_call_operand.vmem [shape: f32[1,128], index: 2, kind: input, shape index: {}]
  %s3 = inlined_call_operand.vmem [shape: f32[2,196,128], index: 3, kind: output, shape index: {}]
  %s4 = sld [smem:[#allocation0]]
  $region45: #{model_forward.1} parent=0
    _
  %s6 = ssub.s32 1, %s4
  %s7 = scalar_select 0, %s6, %s4
  loop: start=0, step=1, limit=4
  $region2: #{model_forward.1} parent=0 // loop_pre_header
    _
  $region3: #{model_forward.1} parent=0 // loop_header
    %s9 = sphi 0, %s13
    %p10 = scmp.ge.s32.totalorder %s9, 4
    %s19 = sphi 0, %s21
    %s22 = sphi 0, %s19
    %s23 = sphi 0, %s22
    %s39 = sphi 0, %s23
    %s43 = sphi 0, %s43
    %s45 = sphi 0, %s43
    %s46 = sphi 0, %s45
    %s60 = sphi 0, %s46
    %s64 = sphi 0, %s64
    %s66 = sphi 0, %s64
    %s67 = sphi 0, %s66
    %s81 = sphi 0, %s67
    %s87 = sphi 0, %s89
    %s90 = sphi 0, %s87
    %s91 = sphi 0, %s90
    %s107 = sphi 0, %s91
  $region4: #{model_forward.1} parent=0 // loop_header_branch
    %12 = sbr.rel (%p10) target = $region8
  $region5: #{model_forward.1} parent=0 // loop_body
    %s14 = ssub.s32 %s9, 1
    %s15 = ssub.s32 %s9, 2
    %s16 = sadd.s32 %s9, 1
    %s17 = ssub.s32 %s9, %s16
    %p18 = scmp.eq.s32.totalorder %s17, 0
    %s20 = sadd.s32 %s19, 1
    %s21 = scalar_select %p18, %s19, %s20
    %p24 = pneg %p18
    %p25 = scmp.eq.s32.totalorder %s9, 1
    %p26 = por %p24, %p25
    %p27 = scmp.ne.s32.totalorder %s19, %s22
    %p28 = scmp.eq.s32.totalorder %s9, 0
    %p29 = por %p27, %p28
    %p30 = scmp.ne.s32.totalorder %s19, %s22
    %p31 = scmp.eq.s32.totalorder %s14, 1
    %p32 = por %p30, %p31
    %p33 = scmp.ne.s32.totalorder %s22, %s23
    %p34 = scmp.eq.s32.totalorder %s14, 0
    %p35 = por %p33, %p34
    %p36 = scmp.ne.s32.totalorder %s22, %s23
    %p37 = scmp.eq.s32.totalorder %s15, 1
    %p38 = por %p36, %p37
    %p40 = scmp.ne.s32.totalorder %s23, %s39
    %p41 = scmp.eq.s32.totalorder %s15, 0
    %p42 = por %p40, %p41
    %s44 = sadd.s32 %s43, 1
    %p47 = scmp.eq.s32.totalorder %s9, 1
    %p48 = scmp.ne.s32.totalorder %s43, %s45
    %p49 = scmp.eq.s32.totalorder %s9, 0
    %p50 = por %p48, %p49
    %p51 = scmp.ne.s32.totalorder %s43, %s45
    %p52 = scmp.eq.s32.totalorder %s14, 1
    %p53 = por %p51, %p52
    %p54 = scmp.ne.s32.totalorder %s45, %s46
    %p55 = scmp.eq.s32.totalorder %s14, 0
    %p56 = por %p54, %p55
    %p57 = scmp.ne.s32.totalorder %s45, %s46
    %p58 = scmp.eq.s32.totalorder %s15, 1
    %p59 = por %p57, %p58
    %p61 = scmp.ne.s32.totalorder %s46, %s60
    %p62 = scmp.eq.s32.totalorder %s15, 0
    %p63 = por %p61, %p62
    %s65 = sadd.s32 %s64, 1
    %p68 = scmp.eq.s32.totalorder %s9, 1
    %p69 = scmp.ne.s32.totalorder %s64, %s66
    %p70 = scmp.eq.s32.totalorder %s9, 0
    %p71 = por %p69, %p70
    %p72 = scmp.ne.s32.totalorder %s64, %s66
    %p73 = scmp.eq.s32.totalorder %s14, 1
    %p74 = por %p72, %p73
    %p75 = scmp.ne.s32.totalorder %s66, %s67
    %p76 = scmp.eq.s32.totalorder %s14, 0
    %p77 = por %p75, %p76
    %p78 = scmp.ne.s32.totalorder %s66, %s67
    %p79 = scmp.eq.s32.totalorder %s15, 1
    %p80 = por %p78, %p79
    %p82 = scmp.ne.s32.totalorder %s67, %s81
    %p83 = scmp.eq.s32.totalorder %s15, 0
    %p84 = por %p82, %p83
    %s85 = ssub.s32 %s9, %s16
    %p86 = scmp.eq.s32.totalorder %s85, 0
    %s88 = sadd.s32 %s87, 1
    %s89 = scalar_select %p86, %s87, %s88
    %p92 = pneg %p86
    %p93 = scmp.eq.s32.totalorder %s9, 1
    %p94 = por %p92, %p93
    %p95 = scmp.ne.s32.totalorder %s87, %s90
    %p96 = scmp.eq.s32.totalorder %s9, 0
    %p97 = por %p95, %p96
    %p98 = scmp.ne.s32.totalorder %s87, %s90
    %p99 = scmp.eq.s32.totalorder %s14, 1
    %p100 = por %p98, %p99
    %p101 = scmp.ne.s32.totalorder %s90, %s91
    %p102 = scmp.eq.s32.totalorder %s14, 0
    %p103 = por %p101, %p102
    %p104 = scmp.ne.s32.totalorder %s90, %s91
    %p105 = scmp.eq.s32.totalorder %s15, 1
    %p106 = por %p104, %p105
    %p108 = scmp.ne.s32.totalorder %s91, %s107
    %p109 = scmp.eq.s32.totalorder %s15, 0
    %p110 = por %p108, %p109
    %p111 = scmp.le.s32.totalorder 1, %s9
    %p112 = scmp.lt.s32.totalorder %s9, 3
    %p113 = pnand %p111, %p112
    %p114 = pneg %p113
    // Predicated region
    $region9: #{model_forward.1} parent=5 // pred_check
      _
    $region10: #{model_forward.1} parent=5 // pred_check_branch
      %116 = sbr.rel (%p113) target = $region12
    $region11: #{model_forward.1} parent=5 // pred_region
      %s117 = ssub.s32 %s9, 1
      // Predicated region
      $region13: #{model_forward.1} parent=11 // pred_check
        %p118 = pneg %p56
      $region14: #{model_forward.1} parent=11 // pred_check_branch
        %120 = sbr.rel (%p118) target = $region16
      $region15: #{model_forward.1} parent=11 // pred_region
        _
      $region16: #{model_forward.1} parent=11 // pred_fallthru
        _
      // Predicated region
      $region17: #{model_forward.1} parent=11 // pred_check
        %p121 = pneg %p77
      $region18: #{model_forward.1} parent=11 // pred_check_branch
        %123 = sbr.rel (%p121) target = $region20
      $region19: #{model_forward.1} parent=11 // pred_region
        _
      $region20: #{model_forward.1} parent=11 // pred_fallthru
        _
    $region12: #{model_forward.1} parent=5 // pred_fallthru
      _
    %p124 = scmp.lt.s32.totalorder %s9, 2
    // Predicated region
    $region21: #{model_forward.1} parent=5 // pred_check
      %p125 = pneg %p124
    $region22: #{model_forward.1} parent=5 // pred_check_branch
      %127 = sbr.rel (%p125) target = $region24
    $region23: #{model_forward.1} parent=5 // pred_region
      // Predicated region
      $region25: #{model_forward.1} parent=23 // pred_check
        %p128 = pneg %p29
      $region26: #{model_forward.1} parent=23 // pred_check_branch
        %130 = sbr.rel (%p128) target = $region28
      $region27: #{model_forward.1} parent=23 // pred_region
        %p131 = scmp.lt.s32.totalorder %s9, 1
        %s132 = scalar_select %p131, %s9, 1
        %s133 = smul.addr %s132, 32
        %s134 = smul.addr %s133, 8
        %s135 = scalar_lea.vmem %s0, %s134
      $region28: #{model_forward.1} parent=23 // pred_fallthru
        _
    $region24: #{model_forward.1} parent=5 // pred_fallthru
      _
    %p136 = scmp.le.s32.totalorder 1, %s9
    %p137 = scmp.lt.s32.totalorder %s9, 3
    %p138 = pnand %p136, %p137
    %p139 = pneg %p138
    // Predicated region
    $region29: #{model_forward.1} parent=5 // pred_check
      _
    $region30: #{model_forward.1} parent=5 // pred_check_branch
      %141 = sbr.rel (%p138) target = $region32
    $region31: #{model_forward.1} parent=5 // pred_region
      %s142 = ssub.s32 %s9, 1
      %p143 = scmp.lt.s32.totalorder %s14, 1
      %s144 = scalar_select %p143, %s14, 1
      %s145 = smul.addr %s144, 32
      %s146 = smul.addr %s145, 8
      %s147 = scalar_lea.vmem %s0, %s146
      %p148 = pneg %p35
      %p149 = pneg %p32
      %p150 = pneg %p56
      %p151 = pneg %p53
      %p152 = pneg %p77
      %p153 = pneg %p74
      %p154 = pneg %p103
      %p155 = pneg %p100
      %p156 = scmp.lt.s32.totalorder %s14, 1
      %s157 = scalar_select %p156, %s14, 1
      %s158 = smul.addr %s157, 25
      %s159 = smul.addr %s158, 8
      %s160 = scalar_lea.vmem %s3, %s159
      %p161 = scmp.lt.s32.totalorder %s14, 1
      %s162 = scalar_select %p161, %s14, 1
      %s163 = smul.addr %s162, 32
      %s164 = smul.addr %s163, 8
      %s165 = scalar_lea.vmem %s0, %s164
      %p166 = scmp.lt.s32.totalorder %s14, 1
      %s167 = scalar_select %p166, %s14, 1
      %s168 = smul.addr %s167, 25
      %s169 = smul.addr %s168, 8
      %s170 = scalar_lea.vmem %s3, %s169
      %v171 = vld [vmem:[%s165] sm:$0xff]
      %v172 = vld [vmem:[%s165 + $0x8] sm:$0x3f]
      %v173 = vld [vmem:[%s165 + $0x10] sm:$0xff]
      %v174 = vld [vmem:[%s165 + $0x18] sm:$0x3f]
      %v175 = vld [vmem:[%s165 + $0x20] sm:$0xff]
      %v176 = vld [vmem:[%s165 + $0x28] sm:$0x3f]
      %v177 = vld [vmem:[%s165 + $0x30] sm:$0xff]
      %v178 = vld [vmem:[%s165 + $0x38] sm:$0x3f]
      %v179 = vld [vmem:[%s165 + $0x40] sm:$0xff]
      %v180 = vld [vmem:[%s165 + $0x48] sm:$0x3f]
      %v181 = vld [vmem:[%s165 + $0x50] sm:$0xff]
      %v182 = vld [vmem:[%s165 + $0x58] sm:$0x3f]
      %v183 = vld [vmem:[%s165 + $0x60] sm:$0xff]
      %v184 = vld [vmem:[%s165 + $0x68] sm:$0x3f]
      %v185 = vld [vmem:[%s165 + $0x70] sm:$0xff]
      %v186 = vld [vmem:[%s165 + $0x78] sm:$0x3f]
      %v187 = vld [vmem:[%s165 + $0x80] sm:$0xff]
      %v188 = vld [vmem:[%s165 + $0x88] sm:$0x3f]
      %v189 = vld [vmem:[%s165 + $0x90] sm:$0xff]
      %v190 = vld [vmem:[%s165 + $0x98] sm:$0x3f]
      %v191 = vld [vmem:[%s165 + $0xa0] sm:$0xff]
      %v192 = vld [vmem:[%s165 + $0xa8] sm:$0x3f]
      %v193 = vld [vmem:[%s165 + $0xb0] sm:$0xff]
      %v194 = vld [vmem:[%s165 + $0xb8] sm:$0x3f]
      %v195 = vld [vmem:[%s165 + $0xc0] sm:$0xff]
      %v196 = vld [vmem:[%s165 + $0xc8] sm:$0x3f]
      %v197 = vld [vmem:[%s165 + $0xd0] sm:$0xff]
      %v198 = vld [vmem:[%s165 + $0xd8] sm:$0x3f]
      %v199 = vld [vmem:[%s165 + $0x1] sm:$0xff]
      %v200 = vld [vmem:[%s165 + $0x9] sm:$0x3f]
      %v201 = vld [vmem:[%s165 + $0x11] sm:$0xff]
      %v202 = vld [vmem:[%s165 + $0x19] sm:$0x3f]
      %v203 = vld [vmem:[%s165 + $0x21] sm:$0xff]
      %v204 = vld [vmem:[%s165 + $0x29] sm:$0x3f]
      %v205 = vld [vmem:[%s165 + $0x31] sm:$0xff]
      %v206 = vld [vmem:[%s165 + $0x39] sm:$0x3f]
      %v207 = vld [vmem:[%s165 + $0x41] sm:$0xff]
      %v208 = vld [vmem:[%s165 + $0x49] sm:$0x3f]
      %v209 = vld [vmem:[%s165 + $0x51] sm:$0xff]
      %v210 = vld [vmem:[%s165 + $0x59] sm:$0x3f]
      %v211 = vld [vmem:[%s165 + $0x61] sm:$0xff]
      %v212 = vld [vmem:[%s165 + $0x69] sm:$0x3f]
      %v213 = vld [vmem:[%s165 + $0x71] sm:$0xff]
      %v214 = vld [vmem:[%s165 + $0x79] sm:$0x3f]
      %v215 = vld [vmem:[%s165 + $0x81] sm:$0xff]
      %v216 = vld [vmem:[%s165 + $0x89] sm:$0x3f]
      %v217 = vld [vmem:[%s165 + $0x91] sm:$0xff]
      %v218 = vld [vmem:[%s165 + $0x99] sm:$0x3f]
      %v219 = vld [vmem:[%s165 + $0xa1] sm:$0xff]
      %v220 = vld [vmem:[%s165 + $0xa9] sm:$0x3f]
      %v221 = vld [vmem:[%s165 + $0xb1] sm:$0xff]
      %v222 = vld [vmem:[%s165 + $0xb9] sm:$0x3f]
      %v223 = vld [vmem:[%s165 + $0xc1] sm:$0xff]
      %v224 = vld [vmem:[%s165 + $0xc9] sm:$0x3f]
      %v225 = vld [vmem:[%s165 + $0xd1] sm:$0xff]
      %v226 = vld [vmem:[%s165 + $0xd9] sm:$0x3f]
      %v227 = vld [vmem:[%s165 + $0x2] sm:$0xff]
      %v228 = vld [vmem:[%s165 + $0xa] sm:$0x3f]
      %v229 = vld [vmem:[%s165 + $0x12] sm:$0xff]
      %v230 = vld [vmem:[%s165 + $0x1a] sm:$0x3f]
      %v231 = vld [vmem:[%s165 + $0x22] sm:$0xff]
      %v232 = vld [vmem:[%s165 + $0x2a] sm:$0x3f]
      %v233 = vld [vmem:[%s165 + $0x32] sm:$0xff]
      %v234 = vld [vmem:[%s165 + $0x3a] sm:$0x3f]
      %v235 = vld [vmem:[%s165 + $0x42] sm:$0xff]
      %v236 = vld [vmem:[%s165 + $0x4a] sm:$0x3f]
      %v237 = vld [vmem:[%s165 + $0x52] sm:$0xff]
      %v238 = vld [vmem:[%s165 + $0x5a] sm:$0x3f]
      %v239 = vld [vmem:[%s165 + $0x62] sm:$0xff]
      %v240 = vld [vmem:[%s165 + $0x6a] sm:$0x3f]
      %v241 = vld [vmem:[%s165 + $0x72] sm:$0xff]
      %v242 = vld [vmem:[%s165 + $0x7a] sm:$0x3f]
      %v243 = vld [vmem:[%s165 + $0x82] sm:$0xff]
      %v244 = vld [vmem:[%s165 + $0x8a] sm:$0x3f]
      %v245 = vld [vmem:[%s165 + $0x92] sm:$0xff]
      %v246 = vld [vmem:[%s165 + $0x9a] sm:$0x3f]
      %v247 = vld [vmem:[%s165 + $0xa2] sm:$0xff]
      %v248 = vld [vmem:[%s165 + $0xaa] sm:$0x3f]
      %v249 = vld [vmem:[%s165 + $0xb2] sm:$0xff]
      %v250 = vld [vmem:[%s165 + $0xba] sm:$0x3f]
      %v251 = vld [vmem:[%s165 + $0xc2] sm:$0xff]
      %v252 = vld [vmem:[%s165 + $0xca] sm:$0x3f]
      %v253 = vld [vmem:[%s165 + $0xd2] sm:$0xff]
      %v254 = vld [vmem:[%s165 + $0xda] sm:$0x3f]
      %s255 = scalar_lea.vmem %s165, 16
      %v256 = vld [vmem:[%s255] sm:$0xff]
      %v257 = vld [vmem:[%s255 + $0x8] sm:$0x3f]
      %v258 = vld [vmem:[%s255 + $0x10] sm:$0xff]
      %v259 = vld [vmem:[%s255 + $0x18] sm:$0x3f]
      %v260 = vld [vmem:[%s255 + $0x20] sm:$0xff]
      %v261 = vld [vmem:[%s255 + $0x28] sm:$0x3f]
      %v262 = vld [vmem:[%s255 + $0x30] sm:$0xff]
      %v263 = vld [vmem:[%s255 + $0x38] sm:$0x3f]
      %v264 = vld [vmem:[%s255 + $0x40] sm:$0xff]
      %v265 = vld [vmem:[%s255 + $0x48] sm:$0x3f]
      %v266 = vld [vmem:[%s255 + $0x50] sm:$0xff]
      %v267 = vld [vmem:[%s255 + $0x58] sm:$0x3f]
      %v268 = vld [vmem:[%s255 + $0x60] sm:$0xff]
      %v269 = vld [vmem:[%s255 + $0x68] sm:$0x3f]
      %v270 = vld [vmem:[%s255 + $0x70] sm:$0xff]
      %v271 = vld [vmem:[%s255 + $0x78] sm:$0x3f]
      %v272 = vld [vmem:[%s255 + $0x80] sm:$0xff]
      %v273 = vld [vmem:[%s255 + $0x88] sm:$0x3f]
      %v274 = vld [vmem:[%s255 + $0x90] sm:$0xff]
      %v275 = vld [vmem:[%s255 + $0x98] sm:$0x3f]
      %v276 = vld [vmem:[%s255 + $0xa0] sm:$0xff]
      %v277 = vld [vmem:[%s255 + $0xa8] sm:$0x3f]
      %v278 = vld [vmem:[%s255 + $0xb0] sm:$0xff]
      %v279 = vld [vmem:[%s255 + $0xb8] sm:$0x3f]
      %v280 = vld [vmem:[%s255 + $0xc0] sm:$0xff]
      %v281 = vld [vmem:[%s255 + $0xc8] sm:$0x3f]
      %v282 = vld [vmem:[%s255 + $0xd0] sm:$0xff]
      %v283 = vld [vmem:[%s255 + $0xd8] sm:$0x3f]
      %v284 = vld [vmem:[%s255 + $0x1] sm:$0xff]
      %v285 = vld [vmem:[%s255 + $0x9] sm:$0x3f]
      %v286 = vld [vmem:[%s255 + $0x11] sm:$0xff]
      %v287 = vld [vmem:[%s255 + $0x19] sm:$0x3f]
      %v288 = vld [vmem:[%s255 + $0x21] sm:$0xff]
      %v289 = vld [vmem:[%s255 + $0x29] sm:$0x3f]
      %v290 = vld [vmem:[%s255 + $0x31] sm:$0xff]
      %v291 = vld [vmem:[%s255 + $0x39] sm:$0x3f]
      %v292 = vld [vmem:[%s255 + $0x41] sm:$0xff]
      %v293 = vld [vmem:[%s255 + $0x49] sm:$0x3f]
      %v294 = vld [vmem:[%s255 + $0x51] sm:$0xff]
      %v295 = vld [vmem:[%s255 + $0x59] sm:$0x3f]
      %v296 = vld [vmem:[%s255 + $0x61] sm:$0xff]
      %v297 = vld [vmem:[%s255 + $0x69] sm:$0x3f]
      %v298 = vld [vmem:[%s255 + $0x71] sm:$0xff]
      %v299 = vld [vmem:[%s255 + $0x79] sm:$0x3f]
      %v300 = vld [vmem:[%s255 + $0x81] sm:$0xff]
      %v301 = vld [vmem:[%s255 + $0x89] sm:$0x3f]
      %v302 = vld [vmem:[%s255 + $0x91] sm:$0xff]
      %v303 = vld [vmem:[%s255 + $0x99] sm:$0x3f]
      %v304 = vld [vmem:[%s255 + $0xa1] sm:$0xff]
      %v305 = vld [vmem:[%s255 + $0xa9] sm:$0x3f]
      %v306 = vld [vmem:[%s255 + $0xb1] sm:$0xff]
      %v307 = vld [vmem:[%s255 + $0xb9] sm:$0x3f]
      %v308 = vld [vmem:[%s255 + $0xc1] sm:$0xff]
      %v309 = vld [vmem:[%s255 + $0xc9] sm:$0x3f]
      %v310 = vld [vmem:[%s255 + $0xd1] sm:$0xff]
      %v311 = vld [vmem:[%s255 + $0xd9] sm:$0x3f]
      %v312 = vld [vmem:[%s255 + $0x2] sm:$0xff]
      %v313 = vld [vmem:[%s255 + $0xa] sm:$0x3f]
      %v314 = vld [vmem:[%s255 + $0x12] sm:$0xff]
      %v315 = vld [vmem:[%s255 + $0x1a] sm:$0x3f]
      %v316 = vld [vmem:[%s255 + $0x22] sm:$0xff]
      %v317 = vld [vmem:[%s255 + $0x2a] sm:$0x3f]
      %v318 = vld [vmem:[%s255 + $0x32] sm:$0xff]
      %v319 = vld [vmem:[%s255 + $0x3a] sm:$0x3f]
      %v320 = vld [vmem:[%s255 + $0x42] sm:$0xff]
      %v321 = vld [vmem:[%s255 + $0x4a] sm:$0x3f]
      %v322 = vld [vmem:[%s255 + $0x52] sm:$0xff]
      %v323 = vld [vmem:[%s255 + $0x5a] sm:$0x3f]
      %v324 = vld [vmem:[%s255 + $0x62] sm:$0xff]
      %v325 = vld [vmem:[%s255 + $0x6a] sm:$0x3f]
      %v326 = vld [vmem:[%s255 + $0x72] sm:$0xff]
      %v327 = vld [vmem:[%s255 + $0x7a] sm:$0x3f]
      %v328 = vld [vmem:[%s255 + $0x82] sm:$0xff]
      %v329 = vld [vmem:[%s255 + $0x8a] sm:$0x3f]
      %v330 = vld [vmem:[%s255 + $0x92] sm:$0xff]
      %v331 = vld [vmem:[%s255 + $0x9a] sm:$0x3f]
      %v332 = vld [vmem:[%s255 + $0xa2] sm:$0xff]
      %v333 = vld [vmem:[%s255 + $0xaa] sm:$0x3f]
      %v334 = vld [vmem:[%s255 + $0xb2] sm:$0xff]
      %v335 = vld [vmem:[%s255 + $0xba] sm:$0x3f]
      %v336 = vld [vmem:[%s255 + $0xc2] sm:$0xff]
      %v337 = vld [vmem:[%s255 + $0xca] sm:$0x3f]
      %v338 = vld [vmem:[%s255 + $0xd2] sm:$0xff]
      %v339 = vld [vmem:[%s255 + $0xda] sm:$0x3f]
      %s340 = scalar_lea.vmem %s165, 32
      %v341 = vld [vmem:[%s340] sm:$0xff]
      %v342 = vld [vmem:[%s340 + $0x8] sm:$0x3f]
      %v343 = vld [vmem:[%s340 + $0x10] sm:$0xff]
      %v344 = vld [vmem:[%s340 + $0x18] sm:$0x3f]
      %v345 = vld [vmem:[%s340 + $0x20] sm:$0xff]
      %v346 = vld [vmem:[%s340 + $0x28] sm:$0x3f]
      %v347 = vld [vmem:[%s340 + $0x30] sm:$0xff]
      %v348 = vld [vmem:[%s340 + $0x38] sm:$0x3f]
      %v349 = vld [vmem:[%s340 + $0x40] sm:$0xff]
      %v350 = vld [vmem:[%s340 + $0x48] sm:$0x3f]
      %v351 = vld [vmem:[%s340 + $0x50] sm:$0xff]
      %v352 = vld [vmem:[%s340 + $0x58] sm:$0x3f]
      %v353 = vld [vmem:[%s340 + $0x60] sm:$0xff]
      %v354 = vld [vmem:[%s340 + $0x68] sm:$0x3f]
      %v355 = vld [vmem:[%s340 + $0x70] sm:$0xff]
      %v356 = vld [vmem:[%s340 + $0x78] sm:$0x3f]
      %v357 = vld [vmem:[%s340 + $0x80] sm:$0xff]
      %v358 = vld [vmem:[%s340 + $0x88] sm:$0x3f]
      %v359 = vld [vmem:[%s340 + $0x90] sm:$0xff]
      %v360 = vld [vmem:[%s340 + $0x98] sm:$0x3f]
      %v361 = vld [vmem:[%s340 + $0xa0] sm:$0xff]
      %v362 = vld [vmem:[%s340 + $0xa8] sm:$0x3f]
      %v363 = vld [vmem:[%s340 + $0xb0] sm:$0xff]
      %v364 = vld [vmem:[%s340 + $0xb8] sm:$0x3f]
      %v365 = vld [vmem:[%s340 + $0xc0] sm:$0xff]
      %v366 = vld [vmem:[%s340 + $0xc8] sm:$0x3f]
      %v367 = vld [vmem:[%s340 + $0xd0] sm:$0xff]
      %v368 = vld [vmem:[%s340 + $0xd8] sm:$0x3f]
      %v369 = vld [vmem:[%s340 + $0x1] sm:$0xff]
      %v370 = vld [vmem:[%s340 + $0x9] sm:$0x3f]
      %v371 = vld [vmem:[%s340 + $0x11] sm:$0xff]
      %v372 = vld [vmem:[%s340 + $0x19] sm:$0x3f]
      %v373 = vld [vmem:[%s340 + $0x21] sm:$0xff]
      %v374 = vld [vmem:[%s340 + $0x29] sm:$0x3f]
      %v375 = vld [vmem:[%s340 + $0x31] sm:$0xff]
      %v376 = vld [vmem:[%s340 + $0x39] sm:$0x3f]
      %v377 = vld [vmem:[%s340 + $0x41] sm:$0xff]
      %v378 = vld [vmem:[%s340 + $0x49] sm:$0x3f]
      %v379 = vld [vmem:[%s340 + $0x51] sm:$0xff]
      %v380 = vld [vmem:[%s340 + $0x59] sm:$0x3f]
      %v381 = vld [vmem:[%s340 + $0x61] sm:$0xff]
      %v382 = vld [vmem:[%s340 + $0x69] sm:$0x3f]
      %v383 = vld [vmem:[%s340 + $0x71] sm:$0xff]
      %v384 = vld [vmem:[%s340 + $0x79] sm:$0x3f]
      %v385 = vld [vmem:[%s340 + $0x81] sm:$0xff]
      %v386 = vld [vmem:[%s340 + $0x89] sm:$0x3f]
      %v387 = vld [vmem:[%s340 + $0x91] sm:$0xff]
      %v388 = vld [vmem:[%s340 + $0x99] sm:$0x3f]
      %v389 = vld [vmem:[%s340 + $0xa1] sm:$0xff]
      %v390 = vld [vmem:[%s340 + $0xa9] sm:$0x3f]
      %v391 = vld [vmem:[%s340 + $0xb1] sm:$0xff]
      %v392 = vld [vmem:[%s340 + $0xb9] sm:$0x3f]
      %v393 = vld [vmem:[%s340 + $0xc1] sm:$0xff]
      %v394 = vld [vmem:[%s340 + $0xc9] sm:$0x3f]
      %v395 = vld [vmem:[%s340 + $0xd1] sm:$0xff]
      %v396 = vld [vmem:[%s340 + $0xd9] sm:$0x3f]
      %v397 = vld [vmem:[%s340 + $0x2] sm:$0xff]
      %v398 = vld [vmem:[%s340 + $0xa] sm:$0x3f]
      %v399 = vld [vmem:[%s340 + $0x12] sm:$0xff]
      %v400 = vld [vmem:[%s340 + $0x1a] sm:$0x3f]
      %v401 = vld [vmem:[%s340 + $0x22] sm:$0xff]
      %v402 = vld [vmem:[%s340 + $0x2a] sm:$0x3f]
      %v403 = vld [vmem:[%s340 + $0x32] sm:$0xff]
      %v404 = vld [vmem:[%s340 + $0x3a] sm:$0x3f]
      %v405 = vld [vmem:[%s340 + $0x42] sm:$0xff]
      %v406 = vld [vmem:[%s340 + $0x4a] sm:$0x3f]
      %v407 = vld [vmem:[%s340 + $0x52] sm:$0xff]
      %v408 = vld [vmem:[%s340 + $0x5a] sm:$0x3f]
      %v409 = vld [vmem:[%s340 + $0x62] sm:$0xff]
      %v410 = vld [vmem:[%s340 + $0x6a] sm:$0x3f]
      %v411 = vld [vmem:[%s340 + $0x72] sm:$0xff]
      %v412 = vld [vmem:[%s340 + $0x7a] sm:$0x3f]
      %v413 = vld [vmem:[%s340 + $0x82] sm:$0xff]
      %v414 = vld [vmem:[%s340 + $0x8a] sm:$0x3f]
      %v415 = vld [vmem:[%s340 + $0x92] sm:$0xff]
      %v416 = vld [vmem:[%s340 + $0x9a] sm:$0x3f]
      %v417 = vld [vmem:[%s340 + $0xa2] sm:$0xff]
      %v418 = vld [vmem:[%s340 + $0xaa] sm:$0x3f]
      %v419 = vld [vmem:[%s340 + $0xb2] sm:$0xff]
      %v420 = vld [vmem:[%s340 + $0xba] sm:$0x3f]
      %v421 = vld [vmem:[%s340 + $0xc2] sm:$0xff]
      %v422 = vld [vmem:[%s340 + $0xca] sm:$0x3f]
      %v423 = vld [vmem:[%s340 + $0xd2] sm:$0xff]
      %v424 = vld [vmem:[%s340 + $0xda] sm:$0x3f]
      %453 = vrot.lane.b32.xlu0 %v199, 4
      %v454 = vpop.permute.xlu0 %453
      %455 = vrot.lane.b32.xlu0 %v200, 4
      %v456 = vpop.permute.xlu0 %455
      %457 = vrot.lane.b32.xlu0 %v201, 4
      %v458 = vpop.permute.xlu0 %457
      %459 = vrot.lane.b32.xlu0 %v202, 4
      %v460 = vpop.permute.xlu0 %459
      %461 = vrot.lane.b32.xlu0 %v203, 4
      %v462 = vpop.permute.xlu0 %461
      %463 = vrot.lane.b32.xlu0 %v204, 4
      %v464 = vpop.permute.xlu0 %463
      %465 = vrot.lane.b32.xlu0 %v205, 4
      %v466 = vpop.permute.xlu0 %465
      %467 = vrot.lane.b32.xlu0 %v206, 4
      %v468 = vpop.permute.xlu0 %467
      %469 = vrot.lane.b32.xlu0 %v207, 4
      %v470 = vpop.permute.xlu0 %469
      %471 = vrot.lane.b32.xlu0 %v208, 4
      %v472 = vpop.permute.xlu0 %471
      %473 = vrot.lane.b32.xlu0 %v209, 4
      %v474 = vpop.permute.xlu0 %473
      %475 = vrot.lane.b32.xlu0 %v210, 4
      %v476 = vpop.permute.xlu0 %475
      %477 = vrot.lane.b32.xlu0 %v211, 4
      %v478 = vpop.permute.xlu0 %477
      %479 = vrot.lane.b32.xlu0 %v212, 4
      %v480 = vpop.permute.xlu0 %479
      %481 = vrot.lane.b32.xlu0 %v213, 4
      %v482 = vpop.permute.xlu0 %481
      %483 = vrot.lane.b32.xlu0 %v214, 4
      %v484 = vpop.permute.xlu0 %483
      %485 = vrot.lane.b32.xlu0 %v215, 4
      %v486 = vpop.permute.xlu0 %485
      %487 = vrot.lane.b32.xlu0 %v216, 4
      %v488 = vpop.permute.xlu0 %487
      %489 = vrot.lane.b32.xlu0 %v217, 4
      %v490 = vpop.permute.xlu0 %489
      %491 = vrot.lane.b32.xlu0 %v218, 4
      %v492 = vpop.permute.xlu0 %491
      %493 = vrot.lane.b32.xlu0 %v219, 4
      %v494 = vpop.permute.xlu0 %493
      %495 = vrot.lane.b32.xlu0 %v220, 4
      %v496 = vpop.permute.xlu0 %495
      %497 = vrot.lane.b32.xlu0 %v221, 4
      %v498 = vpop.permute.xlu0 %497
      %499 = vrot.lane.b32.xlu0 %v222, 4
      %v500 = vpop.permute.xlu0 %499
      %501 = vrot.lane.b32.xlu0 %v223, 4
      %v502 = vpop.permute.xlu0 %501
      %503 = vrot.lane.b32.xlu0 %v224, 4
      %v504 = vpop.permute.xlu0 %503
      %505 = vrot.lane.b32.xlu0 %v225, 4
      %v506 = vpop.permute.xlu0 %505
      %507 = vrot.lane.b32.xlu0 %v226, 4
      %v508 = vpop.permute.xlu0 %507
      %565 = vrot.lane.b32.xlu0 %v227, 8
      %v566 = vpop.permute.xlu0 %565
      %567 = vrot.lane.b32.xlu0 %v228, 8
      %v568 = vpop.permute.xlu0 %567
      %569 = vrot.lane.b32.xlu0 %v229, 8
      %v570 = vpop.permute.xlu0 %569
      %571 = vrot.lane.b32.xlu0 %v230, 8
      %v572 = vpop.permute.xlu0 %571
      %573 = vrot.lane.b32.xlu0 %v231, 8
      %v574 = vpop.permute.xlu0 %573
      %575 = vrot.lane.b32.xlu0 %v232, 8
      %v576 = vpop.permute.xlu0 %575
      %577 = vrot.lane.b32.xlu0 %v233, 8
      %v578 = vpop.permute.xlu0 %577
      %579 = vrot.lane.b32.xlu0 %v234, 8
      %v580 = vpop.permute.xlu0 %579
      %581 = vrot.lane.b32.xlu0 %v235, 8
      %v582 = vpop.permute.xlu0 %581
      %583 = vrot.lane.b32.xlu0 %v236, 8
      %v584 = vpop.permute.xlu0 %583
      %585 = vrot.lane.b32.xlu0 %v237, 8
      %v586 = vpop.permute.xlu0 %585
      %587 = vrot.lane.b32.xlu0 %v238, 8
      %v588 = vpop.permute.xlu0 %587
      %589 = vrot.lane.b32.xlu0 %v239, 8
      %v590 = vpop.permute.xlu0 %589
      %591 = vrot.lane.b32.xlu0 %v240, 8
      %v592 = vpop.permute.xlu0 %591
      %593 = vrot.lane.b32.xlu0 %v241, 8
      %v594 = vpop.permute.xlu0 %593
      %595 = vrot.lane.b32.xlu0 %v242, 8
      %v596 = vpop.permute.xlu0 %595
      %597 = vrot.lane.b32.xlu0 %v243, 8
      %v598 = vpop.permute.xlu0 %597
      %599 = vrot.lane.b32.xlu0 %v244, 8
      %v600 = vpop.permute.xlu0 %599
      %601 = vrot.lane.b32.xlu0 %v245, 8
      %v602 = vpop.permute.xlu0 %601
      %603 = vrot.lane.b32.xlu0 %v246, 8
      %v604 = vpop.permute.xlu0 %603
      %605 = vrot.lane.b32.xlu0 %v247, 8
      %v606 = vpop.permute.xlu0 %605
      %607 = vrot.lane.b32.xlu0 %v248, 8
      %v608 = vpop.permute.xlu0 %607
      %609 = vrot.lane.b32.xlu0 %v249, 8
      %v610 = vpop.permute.xlu0 %609
      %611 = vrot.lane.b32.xlu0 %v250, 8
      %v612 = vpop.permute.xlu0 %611
      %613 = vrot.lane.b32.xlu0 %v251, 8
      %v614 = vpop.permute.xlu0 %613
      %615 = vrot.lane.b32.xlu0 %v252, 8
      %v616 = vpop.permute.xlu0 %615
      %617 = vrot.lane.b32.xlu0 %v253, 8
      %v618 = vpop.permute.xlu0 %617
      %619 = vrot.lane.b32.xlu0 %v254, 8
      %v620 = vpop.permute.xlu0 %619
      %677 = vrot.lane.b32.xlu0 %v256, 12
      %v678 = vpop.permute.xlu0 %677
      %679 = vrot.lane.b32.xlu0 %v257, 12
      %v680 = vpop.permute.xlu0 %679
      %681 = vrot.lane.b32.xlu0 %v258, 12
      %v682 = vpop.permute.xlu0 %681
      %683 = vrot.lane.b32.xlu0 %v259, 12
      %v684 = vpop.permute.xlu0 %683
      %685 = vrot.lane.b32.xlu0 %v260, 12
      %v686 = vpop.permute.xlu0 %685
      %687 = vrot.lane.b32.xlu0 %v261, 12
      %v688 = vpop.permute.xlu0 %687
      %689 = vrot.lane.b32.xlu0 %v262, 12
      %v690 = vpop.permute.xlu0 %689
      %691 = vrot.lane.b32.xlu0 %v263, 12
      %v692 = vpop.permute.xlu0 %691
      %693 = vrot.lane.b32.xlu0 %v264, 12
      %v694 = vpop.permute.xlu0 %693
      %695 = vrot.lane.b32.xlu0 %v265, 12
      %v696 = vpop.permute.xlu0 %695
      %697 = vrot.lane.b32.xlu0 %v266, 12
      %v698 = vpop.permute.xlu0 %697
      %699 = vrot.lane.b32.xlu0 %v267, 12
      %v700 = vpop.permute.xlu0 %699
      %701 = vrot.lane.b32.xlu0 %v268, 12
      %v702 = vpop.permute.xlu0 %701
      %703 = vrot.lane.b32.xlu0 %v269, 12
      %v704 = vpop.permute.xlu0 %703
      %705 = vrot.lane.b32.xlu0 %v270, 12
      %v706 = vpop.permute.xlu0 %705
      %707 = vrot.lane.b32.xlu0 %v271, 12
      %v708 = vpop.permute.xlu0 %707
      %709 = vrot.lane.b32.xlu0 %v272, 12
      %v710 = vpop.permute.xlu0 %709
      %711 = vrot.lane.b32.xlu0 %v273, 12
      %v712 = vpop.permute.xlu0 %711
      %713 = vrot.lane.b32.xlu0 %v274, 12
      %v714 = vpop.permute.xlu0 %713
      %715 = vrot.lane.b32.xlu0 %v275, 12
      %v716 = vpop.permute.xlu0 %715
      %717 = vrot.lane.b32.xlu0 %v276, 12
      %v718 = vpop.permute.xlu0 %717
      %719 = vrot.lane.b32.xlu0 %v277, 12
      %v720 = vpop.permute.xlu0 %719
      %721 = vrot.lane.b32.xlu0 %v278, 12
      %v722 = vpop.permute.xlu0 %721
      %723 = vrot.lane.b32.xlu0 %v279, 12
      %v724 = vpop.permute.xlu0 %723
      %725 = vrot.lane.b32.xlu0 %v280, 12
      %v726 = vpop.permute.xlu0 %725
      %727 = vrot.lane.b32.xlu0 %v281, 12
      %v728 = vpop.permute.xlu0 %727
      %729 = vrot.lane.b32.xlu0 %v282, 12
      %v730 = vpop.permute.xlu0 %729
      %731 = vrot.lane.b32.xlu0 %v283, 12
      %v732 = vpop.permute.xlu0 %731
      %789 = vrot.lane.b32.xlu0 %v284, 16
      %v790 = vpop.permute.xlu0 %789
      %791 = vrot.lane.b32.xlu0 %v285, 16
      %v792 = vpop.permute.xlu0 %791
      %793 = vrot.lane.b32.xlu0 %v286, 16
      %v794 = vpop.permute.xlu0 %793
      %795 = vrot.lane.b32.xlu0 %v287, 16
      %v796 = vpop.permute.xlu0 %795
      %797 = vrot.lane.b32.xlu0 %v288, 16
      %v798 = vpop.permute.xlu0 %797
      %799 = vrot.lane.b32.xlu0 %v289, 16
      %v800 = vpop.permute.xlu0 %799
      %801 = vrot.lane.b32.xlu0 %v290, 16
      %v802 = vpop.permute.xlu0 %801
      %803 = vrot.lane.b32.xlu0 %v291, 16
      %v804 = vpop.permute.xlu0 %803
      %805 = vrot.lane.b32.xlu0 %v292, 16
      %v806 = vpop.permute.xlu0 %805
      %807 = vrot.lane.b32.xlu0 %v293, 16
      %v808 = vpop.permute.xlu0 %807
      %809 = vrot.lane.b32.xlu0 %v294, 16
      %v810 = vpop.permute.xlu0 %809
      %811 = vrot.lane.b32.xlu0 %v295, 16
      %v812 = vpop.permute.xlu0 %811
      %813 = vrot.lane.b32.xlu0 %v296, 16
      %v814 = vpop.permute.xlu0 %813
      %815 = vrot.lane.b32.xlu0 %v297, 16
      %v816 = vpop.permute.xlu0 %815
      %817 = vrot.lane.b32.xlu0 %v298, 16
      %v818 = vpop.permute.xlu0 %817
      %819 = vrot.lane.b32.xlu0 %v299, 16
      %v820 = vpop.permute.xlu0 %819
      %821 = vrot.lane.b32.xlu0 %v300, 16
      %v822 = vpop.permute.xlu0 %821
      %823 = vrot.lane.b32.xlu0 %v301, 16
      %v824 = vpop.permute.xlu0 %823
      %825 = vrot.lane.b32.xlu0 %v302, 16
      %v826 = vpop.permute.xlu0 %825
      %827 = vrot.lane.b32.xlu0 %v303, 16
      %v828 = vpop.permute.xlu0 %827
      %829 = vrot.lane.b32.xlu0 %v304, 16
      %v830 = vpop.permute.xlu0 %829
      %831 = vrot.lane.b32.xlu0 %v305, 16
      %v832 = vpop.permute.xlu0 %831
      %833 = vrot.lane.b32.xlu0 %v306, 16
      %v834 = vpop.permute.xlu0 %833
      %835 = vrot.lane.b32.xlu0 %v307, 16
      %v836 = vpop.permute.xlu0 %835
      %837 = vrot.lane.b32.xlu0 %v308, 16
      %v838 = vpop.permute.xlu0 %837
      %839 = vrot.lane.b32.xlu0 %v309, 16
      %v840 = vpop.permute.xlu0 %839
      %841 = vrot.lane.b32.xlu0 %v310, 16
      %v842 = vpop.permute.xlu0 %841
      %843 = vrot.lane.b32.xlu0 %v311, 16
      %v844 = vpop.permute.xlu0 %843
      %901 = vrot.lane.b32.xlu0 %v312, 20
      %v902 = vpop.permute.xlu0 %901
      %903 = vrot.lane.b32.xlu0 %v313, 20
      %v904 = vpop.permute.xlu0 %903
      %905 = vrot.lane.b32.xlu0 %v314, 20
      %v906 = vpop.permute.xlu0 %905
      %907 = vrot.lane.b32.xlu0 %v315, 20
      %v908 = vpop.permute.xlu0 %907
      %909 = vrot.lane.b32.xlu0 %v316, 20
      %v910 = vpop.permute.xlu0 %909
      %911 = vrot.lane.b32.xlu0 %v317, 20
      %v912 = vpop.permute.xlu0 %911
      %913 = vrot.lane.b32.xlu0 %v318, 20
      %v914 = vpop.permute.xlu0 %913
      %915 = vrot.lane.b32.xlu0 %v319, 20
      %v916 = vpop.permute.xlu0 %915
      %917 = vrot.lane.b32.xlu0 %v320, 20
      %v918 = vpop.permute.xlu0 %917
      %919 = vrot.lane.b32.xlu0 %v321, 20
      %v920 = vpop.permute.xlu0 %919
      %921 = vrot.lane.b32.xlu0 %v322, 20
      %v922 = vpop.permute.xlu0 %921
      %923 = vrot.lane.b32.xlu0 %v323, 20
      %v924 = vpop.permute.xlu0 %923
      %925 = vrot.lane.b32.xlu0 %v324, 20
      %v926 = vpop.permute.xlu0 %925
      %927 = vrot.lane.b32.xlu0 %v325, 20
      %v928 = vpop.permute.xlu0 %927
      %929 = vrot.lane.b32.xlu0 %v326, 20
      %v930 = vpop.permute.xlu0 %929
      %931 = vrot.lane.b32.xlu0 %v327, 20
      %v932 = vpop.permute.xlu0 %931
      %933 = vrot.lane.b32.xlu0 %v328, 20
      %v934 = vpop.permute.xlu0 %933
      %935 = vrot.lane.b32.xlu0 %v329, 20
      %v936 = vpop.permute.xlu0 %935
      %937 = vrot.lane.b32.xlu0 %v330, 20
      %v938 = vpop.permute.xlu0 %937
      %939 = vrot.lane.b32.xlu0 %v331, 20
      %v940 = vpop.permute.xlu0 %939
      %941 = vrot.lane.b32.xlu0 %v332, 20
      %v942 = vpop.permute.xlu0 %941
      %943 = vrot.lane.b32.xlu0 %v333, 20
      %v944 = vpop.permute.xlu0 %943
      %945 = vrot.lane.b32.xlu0 %v334, 20
      %v946 = vpop.permute.xlu0 %945
      %947 = vrot.lane.b32.xlu0 %v335, 20
      %v948 = vpop.permute.xlu0 %947
      %949 = vrot.lane.b32.xlu0 %v336, 20
      %v950 = vpop.permute.xlu0 %949
      %951 = vrot.lane.b32.xlu0 %v337, 20
      %v952 = vpop.permute.xlu0 %951
      %953 = vrot.lane.b32.xlu0 %v338, 20
      %v954 = vpop.permute.xlu0 %953
      %955 = vrot.lane.b32.xlu0 %v339, 20
      %v956 = vpop.permute.xlu0 %955
      %1013 = vrot.lane.b32.xlu0 %v341, 24
      %v1014 = vpop.permute.xlu0 %1013
      %1015 = vrot.lane.b32.xlu0 %v342, 24
      %v1016 = vpop.permute.xlu0 %1015
      %1017 = vrot.lane.b32.xlu0 %v343, 24
      %v1018 = vpop.permute.xlu0 %1017
      %1019 = vrot.lane.b32.xlu0 %v344, 24
      %v1020 = vpop.permute.xlu0 %1019
      %1021 = vrot.lane.b32.xlu0 %v345, 24
      %v1022 = vpop.permute.xlu0 %1021
      %1023 = vrot.lane.b32.xlu0 %v346, 24
      %v1024 = vpop.permute.xlu0 %1023
      %1025 = vrot.lane.b32.xlu0 %v347, 24
      %v1026 = vpop.permute.xlu0 %1025
      %1027 = vrot.lane.b32.xlu0 %v348, 24
      %v1028 = vpop.permute.xlu0 %1027
      %1029 = vrot.lane.b32.xlu0 %v349, 24
      %v1030 = vpop.permute.xlu0 %1029
      %1031 = vrot.lane.b32.xlu0 %v350, 24
      %v1032 = vpop.permute.xlu0 %1031
      %1033 = vrot.lane.b32.xlu0 %v351, 24
      %v1034 = vpop.permute.xlu0 %1033
      %1035 = vrot.lane.b32.xlu0 %v352, 24
      %v1036 = vpop.permute.xlu0 %1035
      %1037 = vrot.lane.b32.xlu0 %v353, 24
      %v1038 = vpop.permute.xlu0 %1037
      %1039 = vrot.lane.b32.xlu0 %v354, 24
      %v1040 = vpop.permute.xlu0 %1039
      %1041 = vrot.lane.b32.xlu0 %v355, 24
      %v1042 = vpop.permute.xlu0 %1041
      %1043 = vrot.lane.b32.xlu0 %v356, 24
      %v1044 = vpop.permute.xlu0 %1043
      %1045 = vrot.lane.b32.xlu0 %v357, 24
      %v1046 = vpop.permute.xlu0 %1045
      %1047 = vrot.lane.b32.xlu0 %v358, 24
      %v1048 = vpop.permute.xlu0 %1047
      %1049 = vrot.lane.b32.xlu0 %v359, 24
      %v1050 = vpop.permute.xlu0 %1049
      %1051 = vrot.lane.b32.xlu0 %v360, 24
      %v1052 = vpop.permute.xlu0 %1051
      %1053 = vrot.lane.b32.xlu0 %v361, 24
      %v1054 = vpop.permute.xlu0 %1053
      %1055 = vrot.lane.b32.xlu0 %v362, 24
      %v1056 = vpop.permute.xlu0 %1055
      %1057 = vrot.lane.b32.xlu0 %v363, 24
      %v1058 = vpop.permute.xlu0 %1057
      %1059 = vrot.lane.b32.xlu0 %v364, 24
      %v1060 = vpop.permute.xlu0 %1059
      %1061 = vrot.lane.b32.xlu0 %v365, 24
      %v1062 = vpop.permute.xlu0 %1061
      %1063 = vrot.lane.b32.xlu0 %v366, 24
      %v1064 = vpop.permute.xlu0 %1063
      %1065 = vrot.lane.b32.xlu0 %v367, 24
      %v1066 = vpop.permute.xlu0 %1065
      %1067 = vrot.lane.b32.xlu0 %v368, 24
      %v1068 = vpop.permute.xlu0 %1067
      %1125 = vrot.lane.b32.xlu0 %v369, 28
      %v1126 = vpop.permute.xlu0 %1125
      %1127 = vrot.lane.b32.xlu0 %v370, 28
      %v1128 = vpop.permute.xlu0 %1127
      %1129 = vrot.lane.b32.xlu0 %v371, 28
      %v1130 = vpop.permute.xlu0 %1129
      %1131 = vrot.lane.b32.xlu0 %v372, 28
      %v1132 = vpop.permute.xlu0 %1131
      %1133 = vrot.lane.b32.xlu0 %v373, 28
      %v1134 = vpop.permute.xlu0 %1133
      %1135 = vrot.lane.b32.xlu0 %v374, 28
      %v1136 = vpop.permute.xlu0 %1135
      %1137 = vrot.lane.b32.xlu0 %v375, 28
      %v1138 = vpop.permute.xlu0 %1137
      %1139 = vrot.lane.b32.xlu0 %v376, 28
      %v1140 = vpop.permute.xlu0 %1139
      %1141 = vrot.lane.b32.xlu0 %v377, 28
      %v1142 = vpop.permute.xlu0 %1141
      %1143 = vrot.lane.b32.xlu0 %v378, 28
      %v1144 = vpop.permute.xlu0 %1143
      %1145 = vrot.lane.b32.xlu0 %v379, 28
      %v1146 = vpop.permute.xlu0 %1145
      %1147 = vrot.lane.b32.xlu0 %v380, 28
      %v1148 = vpop.permute.xlu0 %1147
      %1149 = vrot.lane.b32.xlu0 %v381, 28
      %v1150 = vpop.permute.xlu0 %1149
      %1151 = vrot.lane.b32.xlu0 %v382, 28
      %v1152 = vpop.permute.xlu0 %1151
      %1153 = vrot.lane.b32.xlu0 %v383, 28
      %v1154 = vpop.permute.xlu0 %1153
      %1155 = vrot.lane.b32.xlu0 %v384, 28
      %v1156 = vpop.permute.xlu0 %1155
      %1157 = vrot.lane.b32.xlu0 %v385, 28
      %v1158 = vpop.permute.xlu0 %1157
      %1159 = vrot.lane.b32.xlu0 %v386, 28
      %v1160 = vpop.permute.xlu0 %1159
      %1161 = vrot.lane.b32.xlu0 %v387, 28
      %v1162 = vpop.permute.xlu0 %1161
      %1163 = vrot.lane.b32.xlu0 %v388, 28
      %v1164 = vpop.permute.xlu0 %1163
      %1165 = vrot.lane.b32.xlu0 %v389, 28
      %v1166 = vpop.permute.xlu0 %1165
      %1167 = vrot.lane.b32.xlu0 %v390, 28
      %v1168 = vpop.permute.xlu0 %1167
      %1169 = vrot.lane.b32.xlu0 %v391, 28
      %v1170 = vpop.permute.xlu0 %1169
      %1171 = vrot.lane.b32.xlu0 %v392, 28
      %v1172 = vpop.permute.xlu0 %1171
      %1173 = vrot.lane.b32.xlu0 %v393, 28
      %v1174 = vpop.permute.xlu0 %1173
      %1175 = vrot.lane.b32.xlu0 %v394, 28
      %v1176 = vpop.permute.xlu0 %1175
      %1177 = vrot.lane.b32.xlu0 %v395, 28
      %v1178 = vpop.permute.xlu0 %1177
      %1179 = vrot.lane.b32.xlu0 %v396, 28
      %v1180 = vpop.permute.xlu0 %1179
      %1237 = vrot.lane.b32.xlu0 %v397, 32
      %v1238 = vpop.permute.xlu0 %1237
      %1239 = vrot.lane.b32.xlu0 %v398, 32
      %v1240 = vpop.permute.xlu0 %1239
      %1241 = vrot.lane.b32.xlu0 %v399, 32
      %v1242 = vpop.permute.xlu0 %1241
      %1243 = vrot.lane.b32.xlu0 %v400, 32
      %v1244 = vpop.permute.xlu0 %1243
      %1245 = vrot.lane.b32.xlu0 %v401, 32
      %v1246 = vpop.permute.xlu0 %1245
      %1247 = vrot.lane.b32.xlu0 %v402, 32
      %v1248 = vpop.permute.xlu0 %1247
      %1249 = vrot.lane.b32.xlu0 %v403, 32
      %v1250 = vpop.permute.xlu0 %1249
      %1251 = vrot.lane.b32.xlu0 %v404, 32
      %v1252 = vpop.permute.xlu0 %1251
      %1253 = vrot.lane.b32.xlu0 %v405, 32
      %v1254 = vpop.permute.xlu0 %1253
      %1255 = vrot.lane.b32.xlu0 %v406, 32
      %v1256 = vpop.permute.xlu0 %1255
      %1257 = vrot.lane.b32.xlu0 %v407, 32
      %v1258 = vpop.permute.xlu0 %1257
      %1259 = vrot.lane.b32.xlu0 %v408, 32
      %v1260 = vpop.permute.xlu0 %1259
      %1261 = vrot.lane.b32.xlu0 %v409, 32
      %v1262 = vpop.permute.xlu0 %1261
      %1263 = vrot.lane.b32.xlu0 %v410, 32
      %v1264 = vpop.permute.xlu0 %1263
      %1265 = vrot.lane.b32.xlu0 %v411, 32
      %v1266 = vpop.permute.xlu0 %1265
      %1267 = vrot.lane.b32.xlu0 %v412, 32
      %v1268 = vpop.permute.xlu0 %1267
      %1269 = vrot.lane.b32.xlu0 %v413, 32
      %v1270 = vpop.permute.xlu0 %1269
      %1271 = vrot.lane.b32.xlu0 %v414, 32
      %v1272 = vpop.permute.xlu0 %1271
      %1273 = vrot.lane.b32.xlu0 %v415, 32
      %v1274 = vpop.permute.xlu0 %1273
      %1275 = vrot.lane.b32.xlu0 %v416, 32
      %v1276 = vpop.permute.xlu0 %1275
      %1277 = vrot.lane.b32.xlu0 %v417, 32
      %v1278 = vpop.permute.xlu0 %1277
      %1279 = vrot.lane.b32.xlu0 %v418, 32
      %v1280 = vpop.permute.xlu0 %1279
      %1281 = vrot.lane.b32.xlu0 %v419, 32
      %v1282 = vpop.permute.xlu0 %1281
      %1283 = vrot.lane.b32.xlu0 %v420, 32
      %v1284 = vpop.permute.xlu0 %1283
      %1285 = vrot.lane.b32.xlu0 %v421, 32
      %v1286 = vpop.permute.xlu0 %1285
      %1287 = vrot.lane.b32.xlu0 %v422, 32
      %v1288 = vpop.permute.xlu0 %1287
      %1289 = vrot.lane.b32.xlu0 %v423, 32
      %v1290 = vpop.permute.xlu0 %1289
      %1291 = vrot.lane.b32.xlu0 %v424, 32
      %v1292 = vpop.permute.xlu0 %1291
      %vm1321 = vcmask 31744
      %v1322 = vsel %vm1321, %v171, %v454
      %v1323 = vsel %vm1321, %v172, %v456
      %v1324 = vsel %vm1321, %v173, %v458
      %v1325 = vsel %vm1321, %v174, %v460
      %v1326 = vsel %vm1321, %v175, %v462
      %v1327 = vsel %vm1321, %v176, %v464
      %v1328 = vsel %vm1321, %v177, %v466
      %v1329 = vsel %vm1321, %v178, %v468
      %v1330 = vsel %vm1321, %v179, %v470
      %v1331 = vsel %vm1321, %v180, %v472
      %v1332 = vsel %vm1321, %v181, %v474
      %v1333 = vsel %vm1321, %v182, %v476
      %v1334 = vsel %vm1321, %v183, %v478
      %v1335 = vsel %vm1321, %v184, %v480
      %v1336 = vsel %vm1321, %v185, %v482
      %v1337 = vsel %vm1321, %v186, %v484
      %v1338 = vsel %vm1321, %v187, %v486
      %v1339 = vsel %vm1321, %v188, %v488
      %v1340 = vsel %vm1321, %v189, %v490
      %v1341 = vsel %vm1321, %v190, %v492
      %v1342 = vsel %vm1321, %v191, %v494
      %v1343 = vsel %vm1321, %v192, %v496
      %v1344 = vsel %vm1321, %v193, %v498
      %v1345 = vsel %vm1321, %v194, %v500
      %v1346 = vsel %vm1321, %v195, %v502
      %v1347 = vsel %vm1321, %v196, %v504
      %v1348 = vsel %vm1321, %v197, %v506
      %v1349 = vsel %vm1321, %v198, %v508
      %vm1350 = vcmask 64512
      %v1351 = vsel %vm1350, %v1322, %v566
      %v1352 = vsel %vm1350, %v1323, %v568
      %v1353 = vsel %vm1350, %v1324, %v570
      %v1354 = vsel %vm1350, %v1325, %v572
      %v1355 = vsel %vm1350, %v1326, %v574
      %v1356 = vsel %vm1350, %v1327, %v576
      %v1357 = vsel %vm1350, %v1328, %v578
      %v1358 = vsel %vm1350, %v1329, %v580
      %v1359 = vsel %vm1350, %v1330, %v582
      %v1360 = vsel %vm1350, %v1331, %v584
      %v1361 = vsel %vm1350, %v1332, %v586
      %v1362 = vsel %vm1350, %v1333, %v588
      %v1363 = vsel %vm1350, %v1334, %v590
      %v1364 = vsel %vm1350, %v1335, %v592
      %v1365 = vsel %vm1350, %v1336, %v594
      %v1366 = vsel %vm1350, %v1337, %v596
      %v1367 = vsel %vm1350, %v1338, %v598
      %v1368 = vsel %vm1350, %v1339, %v600
      %v1369 = vsel %vm1350, %v1340, %v602
      %v1370 = vsel %vm1350, %v1341, %v604
      %v1371 = vsel %vm1350, %v1342, %v606
      %v1372 = vsel %vm1350, %v1343, %v608
      %v1373 = vsel %vm1350, %v1344, %v610
      %v1374 = vsel %vm1350, %v1345, %v612
      %v1375 = vsel %vm1350, %v1346, %v614
      %v1376 = vsel %vm1350, %v1347, %v616
      %v1377 = vsel %vm1350, %v1348, %v618
      %v1378 = vsel %vm1350, %v1349, %v620
      %vm1379 = vcmask 97280
      %v1380 = vsel %vm1379, %v1351, %v678
      %v1381 = vsel %vm1379, %v1352, %v680
      %v1382 = vsel %vm1379, %v1353, %v682
      %v1383 = vsel %vm1379, %v1354, %v684
      %v1384 = vsel %vm1379, %v1355, %v686
      %v1385 = vsel %vm1379, %v1356, %v688
      %v1386 = vsel %vm1379, %v1357, %v690
      %v1387 = vsel %vm1379, %v1358, %v692
      %v1388 = vsel %vm1379, %v1359, %v694
      %v1389 = vsel %vm1379, %v1360, %v696
      %v1390 = vsel %vm1379, %v1361, %v698
      %v1391 = vsel %vm1379, %v1362, %v700
      %v1392 = vsel %vm1379, %v1363, %v702
      %v1393 = vsel %vm1379, %v1364, %v704
      %v1394 = vsel %vm1379, %v1365, %v706
      %v1395 = vsel %vm1379, %v1366, %v708
      %v1396 = vsel %vm1379, %v1367, %v710
      %v1397 = vsel %vm1379, %v1368, %v712
      %v1398 = vsel %vm1379, %v1369, %v714
      %v1399 = vsel %vm1379, %v1370, %v716
      %v1400 = vsel %vm1379, %v1371, %v718
      %v1401 = vsel %vm1379, %v1372, %v720
      %v1402 = vsel %vm1379, %v1373, %v722
      %v1403 = vsel %vm1379, %v1374, %v724
      %v1404 = vsel %vm1379, %v1375, %v726
      %v1405 = vsel %vm1379, %v1376, %v728
      %v1406 = vsel %vm1379, %v1377, %v730
      %v1407 = vsel %vm1379, %v1378, %v732
      %vm1408 = vcmask 130048
      %v1409 = vsel %vm1408, %v1380, %v790
      %v1410 = vsel %vm1408, %v1381, %v792
      %v1411 = vsel %vm1408, %v1382, %v794
      %v1412 = vsel %vm1408, %v1383, %v796
      %v1413 = vsel %vm1408, %v1384, %v798
      %v1414 = vsel %vm1408, %v1385, %v800
      %v1415 = vsel %vm1408, %v1386, %v802
      %v1416 = vsel %vm1408, %v1387, %v804
      %v1417 = vsel %vm1408, %v1388, %v806
      %v1418 = vsel %vm1408, %v1389, %v808
      %v1419 = vsel %vm1408, %v1390, %v810
      %v1420 = vsel %vm1408, %v1391, %v812
      %v1421 = vsel %vm1408, %v1392, %v814
      %v1422 = vsel %vm1408, %v1393, %v816
      %v1423 = vsel %vm1408, %v1394, %v818
      %v1424 = vsel %vm1408, %v1395, %v820
      %v1425 = vsel %vm1408, %v1396, %v822
      %v1426 = vsel %vm1408, %v1397, %v824
      %v1427 = vsel %vm1408, %v1398, %v826
      %v1428 = vsel %vm1408, %v1399, %v828
      %v1429 = vsel %vm1408, %v1400, %v830
      %v1430 = vsel %vm1408, %v1401, %v832
      %v1431 = vsel %vm1408, %v1402, %v834
      %v1432 = vsel %vm1408, %v1403, %v836
      %v1433 = vsel %vm1408, %v1404, %v838
      %v1434 = vsel %vm1408, %v1405, %v840
      %v1435 = vsel %vm1408, %v1406, %v842
      %v1436 = vsel %vm1408, %v1407, %v844
      %vm1437 = vcmask 162816
      %v1438 = vsel %vm1437, %v1409, %v902
      %v1439 = vsel %vm1437, %v1410, %v904
      %v1440 = vsel %vm1437, %v1411, %v906
      %v1441 = vsel %vm1437, %v1412, %v908
      %v1442 = vsel %vm1437, %v1413, %v910
      %v1443 = vsel %vm1437, %v1414, %v912
      %v1444 = vsel %vm1437, %v1415, %v914
      %v1445 = vsel %vm1437, %v1416, %v916
      %v1446 = vsel %vm1437, %v1417, %v918
      %v1447 = vsel %vm1437, %v1418, %v920
      %v1448 = vsel %vm1437, %v1419, %v922
      %v1449 = vsel %vm1437, %v1420, %v924
      %v1450 = vsel %vm1437, %v1421, %v926
      %v1451 = vsel %vm1437, %v1422, %v928
      %v1452 = vsel %vm1437, %v1423, %v930
      %v1453 = vsel %vm1437, %v1424, %v932
      %v1454 = vsel %vm1437, %v1425, %v934
      %v1455 = vsel %vm1437, %v1426, %v936
      %v1456 = vsel %vm1437, %v1427, %v938
      %v1457 = vsel %vm1437, %v1428, %v940
      %v1458 = vsel %vm1437, %v1429, %v942
      %v1459 = vsel %vm1437, %v1430, %v944
      %v1460 = vsel %vm1437, %v1431, %v946
      %v1461 = vsel %vm1437, %v1432, %v948
      %v1462 = vsel %vm1437, %v1433, %v950
      %v1463 = vsel %vm1437, %v1434, %v952
      %v1464 = vsel %vm1437, %v1435, %v954
      %v1465 = vsel %vm1437, %v1436, %v956
      %vm1466 = vcmask 195584
      %v1467 = vsel %vm1466, %v1438, %v1014
      %v1468 = vsel %vm1466, %v1439, %v1016
      %v1469 = vsel %vm1466, %v1440, %v1018
      %v1470 = vsel %vm1466, %v1441, %v1020
      %v1471 = vsel %vm1466, %v1442, %v1022
      %v1472 = vsel %vm1466, %v1443, %v1024
      %v1473 = vsel %vm1466, %v1444, %v1026
      %v1474 = vsel %vm1466, %v1445, %v1028
      %v1475 = vsel %vm1466, %v1446, %v1030
      %v1476 = vsel %vm1466, %v1447, %v1032
      %v1477 = vsel %vm1466, %v1448, %v1034
      %v1478 = vsel %vm1466, %v1449, %v1036
      %v1479 = vsel %vm1466, %v1450, %v1038
      %v1480 = vsel %vm1466, %v1451, %v1040
      %v1481 = vsel %vm1466, %v1452, %v1042
      %v1482 = vsel %vm1466, %v1453, %v1044
      %v1483 = vsel %vm1466, %v1454, %v1046
      %v1484 = vsel %vm1466, %v1455, %v1048
      %v1485 = vsel %vm1466, %v1456, %v1050
      %v1486 = vsel %vm1466, %v1457, %v1052
      %v1487 = vsel %vm1466, %v1458, %v1054
      %v1488 = vsel %vm1466, %v1459, %v1056
      %v1489 = vsel %vm1466, %v1460, %v1058
      %v1490 = vsel %vm1466, %v1461, %v1060
      %v1491 = vsel %vm1466, %v1462, %v1062
      %v1492 = vsel %vm1466, %v1463, %v1064
      %v1493 = vsel %vm1466, %v1464, %v1066
      %v1494 = vsel %vm1466, %v1465, %v1068
      %vm1495 = vcmask 228352
      %v1496 = vsel %vm1495, %v1467, %v1126
      %v1497 = vsel %vm1495, %v1468, %v1128
      %v1498 = vsel %vm1495, %v1469, %v1130
      %v1499 = vsel %vm1495, %v1470, %v1132
      %v1500 = vsel %vm1495, %v1471, %v1134
      %v1501 = vsel %vm1495, %v1472, %v1136
      %v1502 = vsel %vm1495, %v1473, %v1138
      %v1503 = vsel %vm1495, %v1474, %v1140
      %v1504 = vsel %vm1495, %v1475, %v1142
      %v1505 = vsel %vm1495, %v1476, %v1144
      %v1506 = vsel %vm1495, %v1477, %v1146
      %v1507 = vsel %vm1495, %v1478, %v1148
      %v1508 = vsel %vm1495, %v1479, %v1150
      %v1509 = vsel %vm1495, %v1480, %v1152
      %v1510 = vsel %vm1495, %v1481, %v1154
      %v1511 = vsel %vm1495, %v1482, %v1156
      %v1512 = vsel %vm1495, %v1483, %v1158
      %v1513 = vsel %vm1495, %v1484, %v1160
      %v1514 = vsel %vm1495, %v1485, %v1162
      %v1515 = vsel %vm1495, %v1486, %v1164
      %v1516 = vsel %vm1495, %v1487, %v1166
      %v1517 = vsel %vm1495, %v1488, %v1168
      %v1518 = vsel %vm1495, %v1489, %v1170
      %v1519 = vsel %vm1495, %v1490, %v1172
      %v1520 = vsel %vm1495, %v1491, %v1174
      %v1521 = vsel %vm1495, %v1492, %v1176
      %v1522 = vsel %vm1495, %v1493, %v1178
      %v1523 = vsel %vm1495, %v1494, %v1180
      %vm1524 = vcmask 261120
      %v1525 = vsel %vm1524, %v1496, %v1238
      %v1526 = vsel %vm1524, %v1497, %v1240
      %v1527 = vsel %vm1524, %v1498, %v1242
      %v1528 = vsel %vm1524, %v1499, %v1244
      %v1529 = vsel %vm1524, %v1500, %v1246
      %v1530 = vsel %vm1524, %v1501, %v1248
      %v1531 = vsel %vm1524, %v1502, %v1250
      %v1532 = vsel %vm1524, %v1503, %v1252
      %v1533 = vsel %vm1524, %v1504, %v1254
      %v1534 = vsel %vm1524, %v1505, %v1256
      %v1535 = vsel %vm1524, %v1506, %v1258
      %v1536 = vsel %vm1524, %v1507, %v1260
      %v1537 = vsel %vm1524, %v1508, %v1262
      %v1538 = vsel %vm1524, %v1509, %v1264
      %v1539 = vsel %vm1524, %v1510, %v1266
      %v1540 = vsel %vm1524, %v1511, %v1268
      %v1541 = vsel %vm1524, %v1512, %v1270
      %v1542 = vsel %vm1524, %v1513, %v1272
      %v1543 = vsel %vm1524, %v1514, %v1274
      %v1544 = vsel %vm1524, %v1515, %v1276
      %v1545 = vsel %vm1524, %v1516, %v1278
      %v1546 = vsel %vm1524, %v1517, %v1280
      %v1547 = vsel %vm1524, %v1518, %v1282
      %v1548 = vsel %vm1524, %v1519, %v1284
      %v1549 = vsel %vm1524, %v1520, %v1286
      %v1550 = vsel %vm1524, %v1521, %v1288
      %v1551 = vsel %vm1524, %v1522, %v1290
      %v1552 = vsel %vm1524, %v1523, %v1292
      %v1581 = vrot.slane %v1525, 2
      %v1582 = vrot.slane %v1525, 4
      %v1583 = vrot.slane %v1525, 6
      %v1584 = vrot.slane %v1526, 2
      %v1585 = vrot.slane %v1526, 4
      %v1586 = vrot.slane %v1527, 2
      %v1587 = vrot.slane %v1527, 4
      %v1588 = vrot.slane %v1527, 6
      %v1589 = vrot.slane %v1528, 2
      %v1590 = vrot.slane %v1528, 4
      %v1591 = vrot.slane %v1529, 2
      %v1592 = vrot.slane %v1529, 4
      %v1593 = vrot.slane %v1529, 6
      %v1594 = vrot.slane %v1530, 2
      %v1595 = vrot.slane %v1530, 4
      %v1596 = vrot.slane %v1531, 2
      %v1597 = vrot.slane %v1531, 4
      %v1598 = vrot.slane %v1531, 6
      %v1599 = vrot.slane %v1532, 2
      %v1600 = vrot.slane %v1532, 4
      %v1601 = vrot.slane %v1533, 2
      %v1602 = vrot.slane %v1533, 4
      %v1603 = vrot.slane %v1533, 6
      %v1604 = vrot.slane %v1534, 2
      %v1605 = vrot.slane %v1534, 4
      %v1606 = vrot.slane %v1535, 2
      %v1607 = vrot.slane %v1535, 4
      %v1608 = vrot.slane %v1535, 6
      %v1609 = vrot.slane %v1536, 2
      %v1610 = vrot.slane %v1536, 4
      %v1611 = vrot.slane %v1537, 2
      %v1612 = vrot.slane %v1537, 4
      %v1613 = vrot.slane %v1537, 6
      %v1614 = vrot.slane %v1538, 2
      %v1615 = vrot.slane %v1538, 4
      %v1616 = vrot.slane %v1539, 2
      %v1617 = vrot.slane %v1539, 4
      %v1618 = vrot.slane %v1539, 6
      %v1619 = vrot.slane %v1540, 2
      %v1620 = vrot.slane %v1540, 4
      %v1621 = vrot.slane %v1541, 2
      %v1622 = vrot.slane %v1541, 4
      %v1623 = vrot.slane %v1541, 6
      %v1624 = vrot.slane %v1542, 2
      %v1625 = vrot.slane %v1542, 4
      %v1626 = vrot.slane %v1543, 2
      %v1627 = vrot.slane %v1543, 4
      %v1628 = vrot.slane %v1543, 6
      %v1629 = vrot.slane %v1544, 2
      %v1630 = vrot.slane %v1544, 4
      %v1631 = vrot.slane %v1545, 2
      %v1632 = vrot.slane %v1545, 4
      %v1633 = vrot.slane %v1545, 6
      %v1634 = vrot.slane %v1546, 2
      %v1635 = vrot.slane %v1546, 4
      %v1636 = vrot.slane %v1547, 2
      %v1637 = vrot.slane %v1547, 4
      %v1638 = vrot.slane %v1547, 6
      %v1639 = vrot.slane %v1548, 2
      %v1640 = vrot.slane %v1548, 4
      %v1641 = vrot.slane %v1549, 2
      %v1642 = vrot.slane %v1549, 4
      %v1643 = vrot.slane %v1549, 6
      %v1644 = vrot.slane %v1550, 2
      %v1645 = vrot.slane %v1550, 4
      %v1646 = vrot.slane %v1551, 2
      %v1647 = vrot.slane %v1551, 4
      %v1648 = vrot.slane %v1551, 6
      %v1649 = vrot.slane %v1552, 2
      %v1650 = vrot.slane %v1552, 4
      %v1651 = vld [vmem:[%s1] sm:$0xff]
      %v1652 = vld [vmem:[%s1 + $0x8] sm:$0xff]
      %v1653 = vld [vmem:[%s1 + $0x10] sm:$0xff]
      %v1654 = vld [vmem:[%s1 + $0x18] sm:$0xff]
      %v1655 = vld [vmem:[%s1 + $0x20] sm:$0xf]
      %v1656 = vld [vmem:[%s2] sm:$0x1]
      %v1658 = vperm.slane %v1656, 0
      %1660 = vst [vmem:[#allocation1] ss:$4 sm:$0xff] %v1525
      %s1661 = scalar_lea.vmem [#allocation1], 1
      %1662 = vst [vmem:[%s1661] ss:$4 sm:$0xff] %v1581
      %s1663 = scalar_lea.vmem [#allocation1], 2
      %1664 = vst [vmem:[%s1663] ss:$4 sm:$0xff] %v1582
      %s1665 = scalar_lea.vmem [#allocation1], 3
      %1666 = vst [vmem:[%s1665] ss:$4 sm:$0xff] %v1583
      %s1667 = scalar_lea.vmem [#allocation1], 32
      %1668 = vst [vmem:[%s1667] ss:$4 sm:$0xff] %v1526
      %s1669 = scalar_lea.vmem [#allocation1], 33
      %1670 = vst [vmem:[%s1669] ss:$4 sm:$0xff] %v1584
      %s1671 = scalar_lea.vmem [#allocation1], 34
      %1672 = vst [vmem:[%s1671] ss:$4 sm:$0xff] %v1585
      %s1673 = scalar_lea.vmem [#allocation1], 35
      %1674 = vst [vmem:[%s1673] ss:$4 sm:$0xff] %v1527
      %v1675 = vld.sshfl [vmem:[#allocation1] sm:$0xff pattern:$0x73625140]
      %v1676 = vld.sshfl [vmem:[#allocation1 + $0x20] sm:$0xff pattern:$0x73625140]
      %1677 = vst [vmem:[#allocation1] ss:$4 sm:$0xff] %v1586
      %1678 = vst [vmem:[%s1661] ss:$4 sm:$0xff] %v1587
      %1679 = vst [vmem:[%s1663] ss:$4 sm:$0xff] %v1588
      %1680 = vst [vmem:[%s1665] ss:$4 sm:$0xff] %v1528
      %1681 = vst [vmem:[%s1667] ss:$4 sm:$0xff] %v1589
      %1682 = vst [vmem:[%s1669] ss:$4 sm:$0xff] %v1590
      %1683 = vst [vmem:[%s1671] ss:$4 sm:$0xff] %v1529
      %1684 = vst [vmem:[%s1673] ss:$4 sm:$0xff] %v1591
      %v1685 = vld.sshfl [vmem:[#allocation1] sm:$0xff pattern:$0x73625140]
      %v1686 = vld.sshfl [vmem:[#allocation1 + $0x20] sm:$0xff pattern:$0x73625140]
      %1687 = vst [vmem:[#allocation1] ss:$4 sm:$0xff] %v1592
      %1688 = vst [vmem:[%s1661] ss:$4 sm:$0xff] %v1593
      %1689 = vst [vmem:[%s1663] ss:$4 sm:$0xff] %v1530
      %1690 = vst [vmem:[%s1665] ss:$4 sm:$0xff] %v1594
      %1691 = vst [vmem:[%s1667] ss:$4 sm:$0xff] %v1595
      %1692 = vst [vmem:[%s1669] ss:$4 sm:$0xff] %v1531
      %1693 = vst [vmem:[%s1671] ss:$4 sm:$0xff] %v1596
      %1694 = vst [vmem:[%s1673] ss:$4 sm:$0xff] %v1597
      %v1695 = vld.sshfl [vmem:[#allocation1] sm:$0xff pattern:$0x73625140]
      %v1696 = vld.sshfl [vmem:[#allocation1 + $0x20] sm:$0xff pattern:$0x73625140]
      %1697 = vst [vmem:[#allocation1] ss:$4 sm:$0xff] %v1598
      %1698 = vst [vmem:[%s1661] ss:$4 sm:$0xff] %v1532
      %1699 = vst [vmem:[%s1663] ss:$4 sm:$0xff] %v1599
      %1700 = vst [vmem:[%s1665] ss:$4 sm:$0xff] %v1600
      %1701 = vst [vmem:[%s1667] ss:$4 sm:$0xff] %v1533
      %1702 = vst [vmem:[%s1669] ss:$4 sm:$0xff] %v1601
      %1703 = vst [vmem:[%s1671] ss:$4 sm:$0xff] %v1602
      %1704 = vst [vmem:[%s1673] ss:$4 sm:$0xff] %v1603
      %v1705 = vld.sshfl [vmem:[#allocation1] sm:$0xff pattern:$0x73625140]
      %v1706 = vld.sshfl [vmem:[#allocation1 + $0x20] sm:$0xff pattern:$0x73625140]
      %1707 = vst [vmem:[#allocation1] ss:$4 sm:$0xff] %v1534
      %1708 = vst [vmem:[%s1661] ss:$4 sm:$0xff] %v1604
      %1709 = vst [vmem:[%s1663] ss:$4 sm:$0xff] %v1605
      %1710 = vst [vmem:[%s1665] ss:$4 sm:$0xff] %v1535
      %1711 = vst [vmem:[%s1667] ss:$4 sm:$0xff] %v1606
      %1712 = vst [vmem:[%s1669] ss:$4 sm:$0xff] %v1607
      %1713 = vst [vmem:[%s1671] ss:$4 sm:$0xff] %v1608
      %1714 = vst [vmem:[%s1673] ss:$4 sm:$0xff] %v1536
      %v1715 = vld.sshfl [vmem:[#allocation1] sm:$0xff pattern:$0x73625140]
      %v1716 = vld.sshfl [vmem:[#allocation1 + $0x20] sm:$0xff pattern:$0x73625140]
      %1717 = vst [vmem:[#allocation1] ss:$4 sm:$0xff] %v1609
      %1718 = vst [vmem:[%s1661] ss:$4 sm:$0xff] %v1610
      %1719 = vst [vmem:[%s1663] ss:$4 sm:$0xff] %v1537
      %1720 = vst [vmem:[%s1665] ss:$4 sm:$0xff] %v1611
      %1721 = vst [vmem:[%s1667] ss:$4 sm:$0xff] %v1612
      %1722 = vst [vmem:[%s1669] ss:$4 sm:$0xff] %v1613
      %1723 = vst [vmem:[%s1671] ss:$4 sm:$0xff] %v1538
      %1724 = vst [vmem:[%s1673] ss:$4 sm:$0xff] %v1614
      %v1725 = vld.sshfl [vmem:[#allocation1] sm:$0xff pattern:$0x73625140]
      %v1726 = vld.sshfl [vmem:[#allocation1 + $0x20] sm:$0xff pattern:$0x73625140]
      %1727 = vst [vmem:[#allocation1] ss:$4 sm:$0xff] %v1615
      %1728 = vst [vmem:[%s1661] ss:$4 sm:$0xff] %v1539
      %1729 = vst [vmem:[%s1663] ss:$4 sm:$0xff] %v1616
      %1730 = vst [vmem:[%s1665] ss:$4 sm:$0xff] %v1617
      %1731 = vst [vmem:[%s1667] ss:$4 sm:$0xff] %v1618
      %1732 = vst [vmem:[%s1669] ss:$4 sm:$0xff] %v1540
      %1733 = vst [vmem:[%s1671] ss:$4 sm:$0xff] %v1619
      %1734 = vst [vmem:[%s1673] ss:$4 sm:$0xff] %v1620
      %v1735 = vld.sshfl [vmem:[#allocation1] sm:$0xff pattern:$0x73625140]
      %v1736 = vld.sshfl [vmem:[#allocation1 + $0x20] sm:$0xff pattern:$0x73625140]
      %1737 = vst [vmem:[#allocation1] ss:$4 sm:$0xff] %v1541
      %1738 = vst [vmem:[%s1661] ss:$4 sm:$0xff] %v1621
      %1739 = vst [vmem:[%s1663] ss:$4 sm:$0xff] %v1622
      %1740 = vst [vmem:[%s1665] ss:$4 sm:$0xff] %v1623
      %1741 = vst [vmem:[%s1667] ss:$4 sm:$0xff] %v1542
      %1742 = vst [vmem:[%s1669] ss:$4 sm:$0xff] %v1624
      %1743 = vst [vmem:[%s1671] ss:$4 sm:$0xff] %v1625
      %1744 = vst [vmem:[%s1673] ss:$4 sm:$0xff] %v1543
      %v1745 = vld.sshfl [vmem:[#allocation1] sm:$0xff pattern:$0x73625140]
      %v1746 = vld.sshfl [vmem:[#allocation1 + $0x20] sm:$0xff pattern:$0x73625140]
      %1747 = vst [vmem:[#allocation1] ss:$4 sm:$0xff] %v1626
      %1748 = vst [vmem:[%s1661] ss:$4 sm:$0xff] %v1627
      %1749 = vst [vmem:[%s1663] ss:$4 sm:$0xff] %v1628
      %1750 = vst [vmem:[%s1665] ss:$4 sm:$0xff] %v1544
      %1751 = vst [vmem:[%s1667] ss:$4 sm:$0xff] %v1629
      %1752 = vst [vmem:[%s1669] ss:$4 sm:$0xff] %v1630
      %1753 = vst [vmem:[%s1671] ss:$4 sm:$0xff] %v1545
      %1754 = vst [vmem:[%s1673] ss:$4 sm:$0xff] %v1631
      %v1755 = vld.sshfl [vmem:[#allocation1] sm:$0xff pattern:$0x73625140]
      %v1756 = vld.sshfl [vmem:[#allocation1 + $0x20] sm:$0xff pattern:$0x73625140]
      %1757 = vst [vmem:[#allocation1] ss:$4 sm:$0xff] %v1632
      %1758 = vst [vmem:[%s1661] ss:$4 sm:$0xff] %v1633
      %1759 = vst [vmem:[%s1663] ss:$4 sm:$0xff] %v1546
      %1760 = vst [vmem:[%s1665] ss:$4 sm:$0xff] %v1634
      %1761 = vst [vmem:[%s1667] ss:$4 sm:$0xff] %v1635
      %1762 = vst [vmem:[%s1669] ss:$4 sm:$0xff] %v1547
      %1763 = vst [vmem:[%s1671] ss:$4 sm:$0xff] %v1636
      %1764 = vst [vmem:[%s1673] ss:$4 sm:$0xff] %v1637
      %v1765 = vld.sshfl [vmem:[#allocation1] sm:$0xff pattern:$0x73625140]
      %v1766 = vld.sshfl [vmem:[#allocation1 + $0x20] sm:$0xff pattern:$0x73625140]
      %1767 = vst [vmem:[#allocation1] ss:$4 sm:$0xff] %v1638
      %1768 = vst [vmem:[%s1661] ss:$4 sm:$0xff] %v1548
      %1769 = vst [vmem:[%s1663] ss:$4 sm:$0xff] %v1639
      %1770 = vst [vmem:[%s1665] ss:$4 sm:$0xff] %v1640
      %1771 = vst [vmem:[%s1667] ss:$4 sm:$0xff] %v1549
      %1772 = vst [vmem:[%s1669] ss:$4 sm:$0xff] %v1641
      %1773 = vst [vmem:[%s1671] ss:$4 sm:$0xff] %v1642
      %1774 = vst [vmem:[%s1673] ss:$4 sm:$0xff] %v1643
      %v1775 = vld.sshfl [vmem:[#allocation1] sm:$0xff pattern:$0x73625140]
      %v1776 = vld.sshfl [vmem:[#allocation1 + $0x20] sm:$0xff pattern:$0x73625140]
      %1777 = vst [vmem:[#allocation1] ss:$4 sm:$0xff] %v1550
      %1778 = vst [vmem:[%s1661] ss:$4 sm:$0xff] %v1644
      %1779 = vst [vmem:[%s1663] ss:$4 sm:$0xff] %v1645
      %1780 = vst [vmem:[%s1665] ss:$4 sm:$0xff] %v1551
      %1781 = vst [vmem:[%s1667] ss:$4 sm:$0xff] %v1646
      %1782 = vst [vmem:[%s1669] ss:$4 sm:$0xff] %v1647
      %1783 = vst [vmem:[%s1671] ss:$4 sm:$0xff] %v1648
      %1784 = vst [vmem:[%s1673] ss:$4 sm:$0xff] %v1552
      %v1785 = vld.sshfl [vmem:[#allocation1] sm:$0xff pattern:$0x73625140]
      %v1786 = vld.sshfl [vmem:[#allocation1 + $0x20] sm:$0xff pattern:$0x73625140]
      %1787 = vst [vmem:[#allocation1] ss:$4 sm:$0xff] %v1649
      %1788 = vst [vmem:[%s1661] ss:$4 sm:$0xff] %v1650
      %v1789 = vld.sshfl [vmem:[#allocation1] sm:$0xff pattern:$0x73625140]
      %vm1790 = vcmask 293888
      %v1791 = vsel %vm1790, %v1675, 0
      %v1793 = vsel %vm1790, %v1676, 0
      %v1795 = vsel %vm1790, %v1685, 0
      %v1797 = vsel %vm1790, %v1686, 0
      %v1799 = vsel %vm1790, %v1695, 0
      %v1801 = vsel %vm1790, %v1696, 0
      %v1803 = vsel %vm1790, %v1705, 0
      %v1805 = vsel %vm1790, %v1706, 0
      %v1807 = vsel %vm1790, %v1715, 0
      %v1809 = vsel %vm1790, %v1716, 0
      %v1811 = vsel %vm1790, %v1725, 0
      %v1813 = vsel %vm1790, %v1726, 0
      %v1815 = vsel %vm1790, %v1735, 0
      %v1817 = vsel %vm1790, %v1736, 0
      %v1819 = vsel %vm1790, %v1745, 0
      %v1821 = vsel %vm1790, %v1746, 0
      %v1823 = vsel %vm1790, %v1755, 0
      %v1825 = vsel %vm1790, %v1756, 0
      %v1827 = vsel %vm1790, %v1765, 0
      %v1829 = vsel %vm1790, %v1766, 0
      %v1831 = vsel %vm1790, %v1775, 0
      %v1833 = vsel %vm1790, %v1776, 0
      %v1835 = vsel %vm1790, %v1785, 0
      %v1837 = vsel %vm1790, %v1786, 0
      %v1839 = vsel %vm1790, %v1789, 0
      %vm1841 = vcmask 1043456
      %v1843 = vsel %vm1841, %v1655, 0
      %1845 = vmatpush.msra.mxu0 0.0
      %1846 = vmatpush.msra.mxu0 0.0
      %1847 = vmatpush.msra.mxu0 0.0
      %1848 = vmatpush.msra.mxu0 0.0
      %1849 = vmatpush.msra.mxu0 0.0
      %1850 = vmatpush.msra.mxu0 0.0
      %1851 = vmatpush.msra.mxu0 0.0
      %1852 = vmatpush.msra.mxu0 0.0
      %1853 = vmatpush.msra.mxu0 0.0
      %1854 = vmatpush.msra.mxu0 0.0
      %1855 = vmatpush.msra.mxu0 0.0
      %1856 = vmatpush.msra.mxu0 %v1843
      %1857 = vmatpush.msra.mxu0 %v1654
      %1858 = vmatpush.msra.mxu0 %v1653
      %1859 = vmatpush.msra.mxu0 %v1652
      %1860 = vmatpush.msra.mxu0 %v1651
      %1861 = vmatmul.f32.gmra.mxu0 %v1791
      %v1862 = vpop.f32.mrf.mxu0
      %v1863 = vadd.f32 %v1658, %v1862
      %1864 = vmatmul.f32.gmra.mxu0 %v1793
      %v1865 = vpop.f32.mrf.mxu0
      %v1866 = vadd.f32 %v1658, %v1865
      %1867 = vmatmul.f32.gmra.mxu0 %v1795
      %v1868 = vpop.f32.mrf.mxu0
      %v1869 = vadd.f32 %v1658, %v1868
      %1870 = vmatmul.f32.gmra.mxu0 %v1797
      %v1871 = vpop.f32.mrf.mxu0
      %v1872 = vadd.f32 %v1658, %v1871
      %1873 = vmatmul.f32.gmra.mxu0 %v1799
      %v1874 = vpop.f32.mrf.mxu0
      %v1875 = vadd.f32 %v1658, %v1874
      %1876 = vmatmul.f32.gmra.mxu0 %v1801
      %v1877 = vpop.f32.mrf.mxu0
      %v1878 = vadd.f32 %v1658, %v1877
      %1879 = vmatmul.f32.gmra.mxu0 %v1803
      %v1880 = vpop.f32.mrf.mxu0
      %v1881 = vadd.f32 %v1658, %v1880
      %1882 = vmatmul.f32.gmra.mxu0 %v1805
      %v1883 = vpop.f32.mrf.mxu0
      %v1884 = vadd.f32 %v1658, %v1883
      %1885 = vmatmul.f32.gmra.mxu0 %v1807
      %v1886 = vpop.f32.mrf.mxu0
      %v1887 = vadd.f32 %v1658, %v1886
      %1888 = vmatmul.f32.gmra.mxu0 %v1809
      %v1889 = vpop.f32.mrf.mxu0
      %v1890 = vadd.f32 %v1658, %v1889
      %1891 = vmatmul.f32.gmra.mxu0 %v1811
      %v1892 = vpop.f32.mrf.mxu0
      %v1893 = vadd.f32 %v1658, %v1892
      %1894 = vmatmul.f32.gmra.mxu0 %v1813
      %v1895 = vpop.f32.mrf.mxu0
      %v1896 = vadd.f32 %v1658, %v1895
      %1897 = vmatmul.f32.gmra.mxu0 %v1815
      %v1898 = vpop.f32.mrf.mxu0
      %v1899 = vadd.f32 %v1658, %v1898
      %1900 = vmatmul.f32.gmra.mxu0 %v1817
      %v1901 = vpop.f32.mrf.mxu0
      %v1902 = vadd.f32 %v1658, %v1901
      %1903 = vmatmul.f32.gmra.mxu0 %v1819
      %v1904 = vpop.f32.mrf.mxu0
      %v1905 = vadd.f32 %v1658, %v1904
      %1906 = vmatmul.f32.gmra.mxu0 %v1821
      %v1907 = vpop.f32.mrf.mxu0
      %v1908 = vadd.f32 %v1658, %v1907
      %1909 = vmatmul.f32.gmra.mxu0 %v1823
      %v1910 = vpop.f32.mrf.mxu0
      %v1911 = vadd.f32 %v1658, %v1910
      %1912 = vmatmul.f32.gmra.mxu0 %v1825
      %v1913 = vpop.f32.mrf.mxu0
      %v1914 = vadd.f32 %v1658, %v1913
      %1915 = vmatmul.f32.gmra.mxu0 %v1827
      %v1916 = vpop.f32.mrf.mxu0
      %v1917 = vadd.f32 %v1658, %v1916
      %1918 = vmatmul.f32.gmra.mxu0 %v1829
      %v1919 = vpop.f32.mrf.mxu0
      %v1920 = vadd.f32 %v1658, %v1919
      %1921 = vmatmul.f32.gmra.mxu0 %v1831
      %v1922 = vpop.f32.mrf.mxu0
      %v1923 = vadd.f32 %v1658, %v1922
      %1924 = vmatmul.f32.gmra.mxu0 %v1833
      %v1925 = vpop.f32.mrf.mxu0
      %v1926 = vadd.f32 %v1658, %v1925
      %1927 = vmatmul.f32.gmra.mxu0 %v1835
      %v1928 = vpop.f32.mrf.mxu0
      %v1929 = vadd.f32 %v1658, %v1928
      %1930 = vmatmul.f32.gmra.mxu0 %v1837
      %v1931 = vpop.f32.mrf.mxu0
      %v1932 = vadd.f32 %v1658, %v1931
      %1933 = vmatmul.f32.gmra.mxu0 %v1839
      %v1934 = vpop.f32.mrf.mxu0
      %v1935 = vadd.f32 %v1658, %v1934
      %1936 = vdwg.mxu0
      %1937 = vst [vmem:[%s170] sm:$0xff] %v1863
      %1938 = vst [vmem:[%s170 + $0x8] sm:$0xff] %v1866
      %1939 = vst [vmem:[%s170 + $0x10] sm:$0xff] %v1869
      %1940 = vst [vmem:[%s170 + $0x18] sm:$0xff] %v1872
      %1941 = vst [vmem:[%s170 + $0x20] sm:$0xff] %v1875
      %1942 = vst [vmem:[%s170 + $0x28] sm:$0xff] %v1878
      %1943 = vst [vmem:[%s170 + $0x30] sm:$0xff] %v1881
      %1944 = vst [vmem:[%s170 + $0x38] sm:$0xff] %v1884
      %1945 = vst [vmem:[%s170 + $0x40] sm:$0xff] %v1887
      %1946 = vst [vmem:[%s170 + $0x48] sm:$0xff] %v1890
      %1947 = vst [vmem:[%s170 + $0x50] sm:$0xff] %v1893
      %1948 = vst [vmem:[%s170 + $0x58] sm:$0xff] %v1896
      %1949 = vst [vmem:[%s170 + $0x60] sm:$0xff] %v1899
      %1950 = vst [vmem:[%s170 + $0x68] sm:$0xff] %v1902
      %1951 = vst [vmem:[%s170 + $0x70] sm:$0xff] %v1905
      %1952 = vst [vmem:[%s170 + $0x78] sm:$0xff] %v1908
      %1953 = vst [vmem:[%s170 + $0x80] sm:$0xff] %v1911
      %1954 = vst [vmem:[%s170 + $0x88] sm:$0xff] %v1914
      %1955 = vst [vmem:[%s170 + $0x90] sm:$0xff] %v1917
      %1956 = vst [vmem:[%s170 + $0x98] sm:$0xff] %v1920
      %1957 = vst [vmem:[%s170 + $0xa0] sm:$0xff] %v1923
      %1958 = vst [vmem:[%s170 + $0xa8] sm:$0xff] %v1926
      %1959 = vst [vmem:[%s170 + $0xb0] sm:$0xff] %v1929
      %1960 = vst [vmem:[%s170 + $0xb8] sm:$0xff] %v1932
      %1961 = vst [vmem:[%s170 + $0xc0] sm:$0xf] %v1935
      %p1962 = scmp.lt.s32.totalorder %s14, 1
      %s1963 = scalar_select %p1962, %s14, 1
      %s1964 = smul.addr %s1963, 25
      %s1965 = smul.addr %s1964, 8
      %s1966 = scalar_lea.vmem %s3, %s1965
      // Predicated region
      $region33: #{model_forward.1} parent=31 // pred_check
        %p1967 = pneg %p100
      $region34: #{model_forward.1} parent=31 // pred_check_branch
        %1969 = sbr.rel (%p1967) target = $region36
      $region35: #{model_forward.1} parent=31 // pred_region
        _
      $region36: #{model_forward.1} parent=31 // pred_fallthru
        _
    $region32: #{model_forward.1} parent=5 // pred_fallthru
      _
    %p1970 = scmp.le.s32.totalorder 2, %s9
    // Predicated region
    $region37: #{model_forward.1} parent=5 // pred_check
      %p1971 = pneg %p1970
    $region38: #{model_forward.1} parent=5 // pred_check_branch
      %1973 = sbr.rel (%p1971) target = $region40
    $region39: #{model_forward.1} parent=5 // pred_region
      %s1974 = ssub.s32 %s9, 2
      // Predicated region
      $region41: #{model_forward.1} parent=39 // pred_check
        %p1975 = pneg %p106
      $region42: #{model_forward.1} parent=39 // pred_check_branch
        %1977 = sbr.rel (%p1975) target = $region44
      $region43: #{model_forward.1} parent=39 // pred_region
        %p1978 = scmp.lt.s32.totalorder %s15, 1
        %s1979 = scalar_select %p1978, %s15, 1
        %s1980 = smul.addr %s1979, 25
        %s1981 = smul.addr %s1980, 8
        %s1982 = scalar_lea.vmem %s3, %s1981
      $region44: #{model_forward.1} parent=39 // pred_fallthru
        _
    $region40: #{model_forward.1} parent=5 // pred_fallthru
      _
  $region6: #{model_forward.1} parent=0 // loop_footer
    %s13 = sadd.s32 1, %s9
  $region7: #{model_forward.1} parent=0 // loop_footer_branch
    %8 = sbr.rel target = $region3
  $region8: #{model_forward.1} parent=0 // loop_exit
    _

</llo_original>
